<compile_context>
chip_gen: v5e
topology: v5e:2x2
jax: 0.10.0
libtpu: 0.0.40
codegen_flags: <defaults>
</compile_context>

<pallas_src>
import functools
import jax
import jax.numpy as jnp
from jax.experimental import pallas as pl
from jax.experimental.pallas import tpu as pltpu

# ---- module constants (from ts_vad.py) --------------------------------------
EMBED_DIM = 256
MAX_NUMSPK = 4
SEG_LEN = 300
SUBSAMPLE = 8
KPOOL = int(SEG_LEN / SUBSAMPLE)          # 37  (AvgPool1d kernel_size)
PPOOL = int(SEG_LEN / SUBSAMPLE / 2)      # 18  (AvgPool1d padding)
RESNET_FEAT = 2560                        # ResNet34 frame-level feature dim
DFF = 512                                 # Conformer d_ffn
HLSTM = 512                               # LSTM hidden size
OUT_PAD = 128                             # lane-dense padding for final linear


@functools.lru_cache(maxsize=1)
def _vmem_limit():
    # v7x has 64 MiB physical VMEM per TC; v5e/v6e have 128 MiB.
    try:
        kind = jax.devices()[0].device_kind.lower()
    except Exception:
        return 32 * 1024 * 1024
    if "7" in kind:
        return 32 * 1024 * 1024
    return 64 * 1024 * 1024


# =============================================================================
# Generic M-tiled matmul kernel with fused bias, in-kernel bf16 cast of the
# activation operand, and selectable output dtype (bf16 for intermediates).
# Used for the front-end projection and the fused LSTM input projections.
# =============================================================================
def _matmul_bias_kernel(a_ref, b_ref, bias_ref, o_ref):
    a = a_ref[...]
    if a.dtype != jnp.bfloat16:
        a = a.astype(jnp.bfloat16)          # per-tile cast on data already in VMEM
    y = jnp.dot(a, b_ref[...], preferred_element_type=jnp.float32) + bias_ref[...]
    o_ref[...] = y.astype(o_ref.dtype)


def matmul_bias(a, w_bf16, bias_row, out_dtype=jnp.bfloat16, tm=512):
    M, K = a.shape
    K2, N = w_bf16.shape
    assert K == K2
    tm = min(tm, M)
    return pl.pallas_call(
        _matmul_bias_kernel,
        out_shape=jax.ShapeDtypeStruct((M, N), out_dtype),
        grid=(pl.cdiv(M, tm),),
        in_specs=[pl.BlockSpec((tm, K), lambda i: (i, 0)),
                  pl.BlockSpec((K, N), lambda i: (0, 0)),
                  pl.BlockSpec((1, N), lambda i: (0, 0))],
        out_specs=pl.BlockSpec((tm, N), lambda i: (i, 0)),
        compiler_params=pltpu.CompilerParams(
            dimension_semantics=("parallel",),
            vmem_limit_bytes=_vmem_limit()),
    )(a, w_bf16, bias_row)


# =============================================================================
# Fused: frame_level_gsp + transpose + Linear(7680,256) + ReLU.
#   x    : channel-mean embedding (B, T, 2560), fed in bf16
#   mean = AvgPool1d(k=37,s=1,p=18)(x)           (count_include_pad -> /37)
#   std  = sqrt(AvgPool1d((x-mean)^2))
#   out  = relu(concat([x, mean, std], feat) @ W + b)
# Pooling expressed as A @ X with A[t,s] = 1/37 for |t-s| <= 18; A stored bf16
# so both pooling matmuls run bf16xbf16 with f32 accumulation on the MXU.
# =============================================================================
def _gsp_linear_kernel(x_ref, a_ref, wa_ref, wb_ref, wc_ref, b_ref, o_ref):
    x = x_ref[0]                                   # (T, 2560) bf16
    a = a_ref[...]                                 # (T, T)    bf16
    mean = jnp.dot(a, x, preferred_element_type=jnp.float32)          # (T, 2560) f32
    diff = x.astype(jnp.float32) - mean
    d2 = (diff * diff).astype(jnp.bfloat16)
    std = jnp.sqrt(jnp.maximum(
        jnp.dot(a, d2, preferred_element_type=jnp.float32), 0.0))
    y = (jnp.dot(x, wa_ref[...], preferred_element_type=jnp.float32)
         + jnp.dot(mean.astype(jnp.bfloat16), wb_ref[...],
                   preferred_element_type=jnp.float32)
         + jnp.dot(std.astype(jnp.bfloat16), wc_ref[...],
                   preferred_element_type=jnp.float32)
         + b_ref[...])
    o_ref[0] = jnp.maximum(y, 0.0)


def gsp_linear(x_bt, avg_mat, wa, wb, wc, bias):
    B, T, D = x_bt.shape
    E = wa.shape[1]
    return pl.pallas_call(
        _gsp_linear_kernel,
        out_shape=jax.ShapeDtypeStruct((B, T, E), jnp.float32),
        grid=(B,),
        in_specs=[pl.BlockSpec((1, T, D), lambda b: (b, 0, 0)),
                  pl.BlockSpec((T, T), lambda b: (0, 0)),
                  pl.BlockSpec((D, E), lambda b: (0, 0)),
                  pl.BlockSpec((D, E), lambda b: (0, 0)),
                  pl.BlockSpec((D, E), lambda b: (0, 0)),
                  pl.BlockSpec((1, E), lambda b: (0, 0))],
        out_specs=pl.BlockSpec((1, T, E), lambda b: (b, 0, 0)),
        compiler_params=pltpu.CompilerParams(
            dimension_semantics=("parallel",),
            vmem_limit_bytes=_vmem_limit()),
    )(x_bt, avg_mat, wa, wb, wc, bias)


# =============================================================================
# Decoder stack: grid=(Ns,), B folded into the block so FFN matmuls see M=B*T.
# The cross-attention with a length-1 memory has softmax == 1, so the context
# equals (mem @ Wv) @ Wo for every query position; those rows are precomputed
# outside for all (B, Ns, layer) and passed as a small (Ns, L, B, D) tensor.
# TODO(synk): ConformerDecoder is an external (speechbrain-style) module whose
# source is not provided; its convolution / macaron sub-modules and the MHA
# in/out-projection biases are not reproduced — only cross-MHA + FFN + post-LN.
# =============================================================================
def _ln(h, g_ref, b_ref):
    mu = jnp.mean(h, axis=-1, keepdims=True)
    var = jnp.mean((h - mu) ** 2, axis=-1, keepdims=True)
    return (h - mu) * jax.lax.rsqrt(var + 1e-5) * g_ref[...] + b_ref[...]


def _decoder_stack_kernel(x_ref, attn_ref, *refs):
    o_ref = refs[-1]
    w = refs[:-1]
    num_layers = len(w) // 8
    B, T, D = x_ref.shape

    h = x_ref[...]                                 # (B, T, D) f32
    for li in range(num_layers):
        w1, b1, w2, b2, g1, be1, g2, be2 = w[li * 8:(li + 1) * 8]
        attn = attn_ref[0, li]                     # (B, D) f32, per-batch row
        h = _ln(h + attn[:, None, :], g1, be1)     # broadcast over T queries
        h2 = h.reshape(B * T, D).astype(jnp.bfloat16)      # M = B*T for the MXU
        f = jnp.maximum(
            jnp.dot(h2, w1[...], preferred_element_type=jnp.float32) + b1[...],
            0.0)
        f = (jnp.dot(f.astype(jnp.bfloat16), w2[...],
                     preferred_element_type=jnp.float32) + b2[...]
             ).reshape(B, T, D)
        h = _ln(h + f, g2, be2)
    o_ref[...] = h.astype(o_ref.dtype)


def decoder_stack(emb, attn_rows, dec_params):
    B, T, D = emb.shape
    Ns, nl = attn_rows.shape[0], attn_rows.shape[1]

    def full(shape):
        nd = len(shape)
        return pl.BlockSpec(shape, lambda n, _nd=nd: (0,) * _nd)

    w_specs, w_args = [], []
    for lw in dec_params:
        for name, shape in [('w1', (D, DFF)), ('b1', (1, DFF)),
                            ('w2', (DFF, D)), ('b2', (1, D)),
                            ('g1', (1, D)), ('be1', (1, D)),
                            ('g2', (1, D)), ('be2', (1, D))]:
            w_specs.append(full(shape))
            w_args.append(lw[name])

    return pl.pallas_call(
        _decoder_stack_kernel,
        out_shape=jax.ShapeDtypeStruct((B, T, Ns * D), jnp.bfloat16),
        grid=(Ns,),
        in_specs=[pl.BlockSpec((B, T, D), lambda n: (0, 0, 0)),
                  pl.BlockSpec((1, nl, B, D), lambda n: (n, 0, 0, 0))]
                 + w_specs,
        out_specs=pl.BlockSpec((B, T, D), lambda n: (0, 0, n)),
        compiler_params=pltpu.CompilerParams(
            dimension_semantics=("parallel",),
            vmem_limit_bytes=_vmem_limit()),
    )(emb, attn_rows, *w_args)


# =============================================================================
# Fused bidirectional LSTM recurrence: one kernel per layer, both directions
# advanced in the same fori_loop step (fwd at t, bwd at T-1-t) with a single
# (2B,H)@(H,8H) recurrence matmul; w_hh of both directions stays VMEM-resident.
# Output is written directly into a pre-concatenated, un-reversed (T,B,2H)
# bf16 layout (fwd in cols [:H] at t, bwd in cols [H:] at T-1-t).
# TODO(synk): the recurrence is inherently sequential over T.
# =============================================================================
def _bilstm_kernel(xp_ref, whh_ref, o_ref):
    T, B, _ = xp_ref.shape
    H = HLSTM
    whh = whh_ref[...]                             # (H, 8H) bf16, VMEM-resident

    def step(t, carry):
        h, c = carry                               # h (2B,H) bf16, c (2B,H) f32
        gall = jnp.dot(h, whh, preferred_element_type=jnp.float32)   # (2B, 8H)
        xf = xp_ref[t].astype(jnp.float32)               # (B, 8H)
        xb = xp_ref[T - 1 - t].astype(jnp.float32)       # (B, 8H)
        gates_f = xf[:, :4 * H] + gall[:B, :4 * H]
        gates_b = xb[:, 4 * H:] + gall[B:, 4 * H:]
        gates = jnp.concatenate([gates_f, gates_b], axis=0)          # (2B, 4H)
        i = jax.nn.sigmoid(gates[:, 0 * H:1 * H])
        f = jax.nn.sigmoid(gates[:, 1 * H:2 * H])
        g = jnp.tanh(gates[:, 2 * H:3 * H])
        o = jax.nn.sigmoid(gates[:, 3 * H:4 * H])
        c_new = f * c + i * g
        h_new = (o * jnp.tanh(c_new)).astype(jnp.bfloat16)
        o_ref[t, :, 0:H] = h_new[:B]               # fwd hidden at time t
        o_ref[T - 1 - t, :, H:] = h_new[B:]        # bwd hidden at time T-1-t
        return (h_new, c_new)

    h0 = jnp.zeros((2 * B, H), jnp.bfloat16)
    c0 = jnp.zeros((2 * B, H), jnp.float32)
    jax.lax.fori_loop(0, T, step, (h0, c0))


def lstm_layer(x_tb, layer_p):
    # x_tb: (T, B, in_dim) bf16, time-major, un-reversed.
    T, B, in_dim = x_tb.shape
    # ONE input-projection matmul for both directions (bias fused, bf16 out).
    xp = matmul_bias(x_tb.reshape(T * B, in_dim), layer_p['w_ih_cat'],
                     layer_p['b_cat'], out_dtype=jnp.bfloat16)
    xp = xp.reshape(T, B, 8 * HLSTM)
    return pl.pallas_call(
        _bilstm_kernel,
        out_shape=jax.ShapeDtypeStruct((T, B, 2 * HLSTM), jnp.bfloat16),
        grid=(1,),
        in_specs=[pl.BlockSpec((T, B, 8 * HLSTM), lambda i: (0, 0, 0)),
                  pl.BlockSpec((HLSTM, 8 * HLSTM), lambda i: (0, 0))],
        out_specs=pl.BlockSpec((T, B, 2 * HLSTM), lambda i: (0, 0, 0)),
        compiler_params=pltpu.CompilerParams(
            dimension_semantics=("arbitrary",),
            vmem_limit_bytes=_vmem_limit()),
    )(xp, layer_p['w_hh_cat'])


def lstm_forward(x_tb, lstm_params):
    h = x_tb
    for layer_p in lstm_params:
        h = lstm_layer(h, layer_p)
    return h                                       # (T, B, 2H) bf16


# =============================================================================
# Final Linear(1024 -> 4) + sigmoid, lane-dense 128-wide padded output
# (sliced back to 4 columns outside).  Consumes the LSTM's (T,B,2H) bf16
# output directly (reshape only, no concat/transpose HBM pass).
# =============================================================================
def _linear_sigmoid_kernel(x_ref, w_ref, b_ref, o_ref):
    x = x_ref[...]
    if x.dtype != jnp.bfloat16:
        x = x.astype(jnp.bfloat16)
    y = jnp.dot(x, w_ref[...], preferred_element_type=jnp.float32) + b_ref[...]
    o_ref[...] = jax.nn.sigmoid(y)


def linear_sigmoid_padded(x, w_pad, b_pad, tm=512):
    M, K = x.shape
    Np = w_pad.shape[1]
    tm = min(tm, M)
    return pl.pallas_call(
        _linear_sigmoid_kernel,
        out_shape=jax.ShapeDtypeStruct((M, Np), jnp.float32),
        grid=(pl.cdiv(M, tm),),
        in_specs=[pl.BlockSpec((tm, K), lambda i: (i, 0)),
                  pl.BlockSpec((K, Np), lambda i: (0, 0)),
                  pl.BlockSpec((1, Np), lambda i: (0, 0))],
        out_specs=pl.BlockSpec((tm, Np), lambda i: (i, 0)),
        compiler_params=pltpu.CompilerParams(
            dimension_semantics=("parallel",),
            vmem_limit_bytes=_vmem_limit()),
    )(x, w_pad, b_pad)


# =============================================================================
# Full forward pass (Diarize.forward)
# =============================================================================
def diarize_forward(x, embedding_spk, params, n_frames):
    B, C, S = x.shape
    T = n_frames
    hop = S // T

    # ---- front-end: Fbank + InputNormalization + ResNet34.forward_frame -----
    # TODO(synk): Fbank / InputNormalization / ResNet34 definitions are not in
    # the provided source; substituted with deterministic framing + a linear
    # projection producing the same (B, C, T, 2560)-equivalent frame embedding.
    frames = x.reshape(B * C * T, hop)
    frame_emb = matmul_bias(frames, params['w_fe'], params['fe_b'],
                            out_dtype=jnp.bfloat16)            # (B*C*T, 2560)
    frame_emb = frame_emb.reshape(B, C, T, RESNET_FEAT)

    # channel mean over C: cheap XLA reduce, result kept bf16 for the gsp kernel.
    x_bt = jnp.mean(frame_emb, axis=1, dtype=jnp.float32).astype(jnp.bfloat16)

    # frame_level_gsp + Linear(7680,256) + ReLU (fused kernel)
    emb = gsp_linear(x_bt, params['avg_mat'],
                     params['gsp_wa'], params['gsp_wb'], params['gsp_wc'],
                     params['gsp_b'])                          # (B, T, 256) f32

    # ---- channel_level_sp on embedding_spk (B, C, D, N) ----------------------
    # NOTE: in the reference, the attention-weighted sum `mu = sum(x*w, 2)` is
    # immediately overwritten by `mu = x.mean(2)`, so the attention_spk branch
    # is dead code; a trivial XLA channel mean is output-identical.
    spk = jnp.transpose(jnp.mean(embedding_spk, axis=1), (0, 2, 1))  # (B, Ns, D)
    Ns = spk.shape[1]

    # length-1-memory attention rows (spk@Wv)@Wo for all (B, Ns, layer): tiny
    # batched matmuls in XLA; keeps M=1 matmuls and wv/wo refs out of the kernel.
    spk_flat = spk.reshape(B * Ns, EMBED_DIM).astype(jnp.bfloat16)
    attn_list = []
    for lw in params['dec']:
        v = jnp.dot(spk_flat, lw['wv'], preferred_element_type=jnp.float32)
        a = jnp.dot(v.astype(jnp.bfloat16), lw['wo'],
                    preferred_element_type=jnp.float32)
        attn_list.append(a.reshape(B, Ns, EMBED_DIM))
    attn_rows = jnp.stack(attn_list, axis=2)                   # (B, Ns, L, D)
    attn_rows = jnp.transpose(attn_rows, (1, 2, 0, 3))         # (Ns, L, B, D)

    # ---- offline Decoder (speakers in the grid, B folded into the block) -----
    det = decoder_stack(emb, attn_rows, params['dec'])         # (B, T, Ns*D) bf16
    det_tb = jnp.swapaxes(det, 0, 1)                           # (T, B, Ns*D) bf16

    h = lstm_forward(det_tb, params['lstm'])                   # (T, B, 1024) bf16
    y = linear_sigmoid_padded(h.reshape(T * B, 2 * HLSTM),
                              params['out_w_pad'], params['out_b_pad'])
    y = y[:, :MAX_NUMSPK].reshape(T, B, MAX_NUMSPK)
    return jnp.transpose(y, (1, 0, 2))                         # (B, T, Ns)


# =============================================================================
# Deterministic parameter init (MXU weights stored in bf16, pre-transposed;
# per-layer LSTM weights of both directions concatenated).
# =============================================================================
def init_params(key, hop, n_frames):
    keys = iter(jax.random.split(key, 64))
    bf = jnp.bfloat16

    def nrm(shape, scale=0.05, dtype=jnp.float32):
        return (scale * jax.random.normal(next(keys), shape,
                                          jnp.float32)).astype(dtype)

    # AvgPool1d(kernel=37, stride=1, pad=18, count_include_pad) as a matrix.
    idx = jnp.arange(n_frames)
    avg_mat = ((jnp.abs(idx[:, None] - idx[None, :]) <= PPOOL
                ).astype(jnp.float32) / float(KPOOL)).astype(bf)

    p = {
        'avg_mat': avg_mat,
        'w_fe': nrm((hop, RESNET_FEAT), dtype=bf),
        'fe_b': jnp.zeros((1, RESNET_FEAT), jnp.float32),
        'gsp_wa': nrm((RESNET_FEAT, EMBED_DIM), dtype=bf),
        'gsp_wb': nrm((RESNET_FEAT, EMBED_DIM), dtype=bf),
        'gsp_wc': nrm((RESNET_FEAT, EMBED_DIM), dtype=bf),
        'gsp_b': nrm((1, EMBED_DIM)),
    }

    out_w = nrm((2 * HLSTM, MAX_NUMSPK))
    p['out_w_pad'] = (jnp.zeros((2 * HLSTM, OUT_PAD), jnp.float32)
                      .at[:, :MAX_NUMSPK].set(out_w)).astype(bf)
    p['out_b_pad'] = jnp.zeros((1, OUT_PAD), jnp.float32)

    p['dec'] = []
    for _ in range(2):                                   # num_layers = 2
        p['dec'].append(dict(
            # wq / wk omitted: dead with length-1 memory (softmax == 1).
            wv=nrm((EMBED_DIM, EMBED_DIM), dtype=bf),
            wo=nrm((EMBED_DIM, EMBED_DIM), dtype=bf),
            w1=nrm((EMBED_DIM, DFF), dtype=bf),
            b1=jnp.zeros((1, DFF), jnp.float32),
            w2=nrm((DFF, EMBED_DIM), dtype=bf),
            b2=jnp.zeros((1, EMBED_DIM), jnp.float32),
            g1=jnp.ones((1, EMBED_DIM), jnp.float32),
            be1=jnp.zeros((1, EMBED_DIM), jnp.float32),
            g2=jnp.ones((1, EMBED_DIM), jnp.float32),
            be2=jnp.zeros((1, EMBED_DIM), jnp.float32)))

    p['lstm'] = []
    for layer in range(2):
        in_dim = EMBED_DIM * MAX_NUMSPK if layer == 0 else 2 * HLSTM
        w_ih_t, w_hh_t, b = [], [], []
        for _ in range(2):                                # fwd, bwd
            w_ih_t.append(jnp.transpose(nrm((4 * HLSTM, in_dim))))   # (in, 4H)
            w_hh_t.append(jnp.transpose(nrm((4 * HLSTM, HLSTM))))    # (H, 4H)
            b.append(jnp.zeros((4 * HLSTM,), jnp.float32))           # b_ih + b_hh
        p['lstm'].append(dict(
            w_ih_cat=jnp.concatenate(w_ih_t, axis=1).astype(bf),     # (in, 8H)
            w_hh_cat=jnp.concatenate(w_hh_t, axis=1).astype(bf),     # (H, 8H)
            b_cat=jnp.concatenate(b).reshape(1, 8 * HLSTM)))         # (1, 8H)
    return p


# =============================================================================
if __name__ == "__main__":
    # small shapes; feature dims are fixed by the module.  HOP=128 keeps the
    # front-end contraction dim MXU-aligned.
    B, C, T, HOP = 2, 2, 8, 128
    S = T * HOP

    key = jax.random.PRNGKey(0)
    k_x, k_spk, k_p = jax.random.split(key, 3)
    x = jax.random.normal(k_x, (B, C, S), jnp.float32)
    embedding_spk = jax.random.normal(
        k_spk, (B, C, EMBED_DIM, MAX_NUMSPK), jnp.float32)
    params = init_params(k_p, HOP, T)

    fwd = functools.partial(diarize_forward, n_frames=T)
    y = fwd(x, embedding_spk, params)
    y = jax.block_until_ready(y)

    assert y.shape == (B, T, MAX_NUMSPK), y.shape
    assert bool(jnp.all(jnp.isfinite(y)))
    assert bool(jnp.all((y >= 0.0) & (y <= 1.0)))
    print("KERNEL_OK")
</pallas_src>

<mosaic_0001>
module attributes {stable_mosaic.version = 11 : i64} {
  func.func @_matmul_bias_kernel(%arg0: i32, %arg1: memref<32x128xf32, #tpu.memory_space<vmem>>, %arg2: memref<128x2560xbf16, #tpu.memory_space<vmem>>, %arg3: memref<1x2560xf32, #tpu.memory_space<vmem>>, %arg4: memref<32x2560xbf16, #tpu.memory_space<vmem>>) attributes {dimension_semantics = [#tpu.dimension_semantics<parallel>], iteration_bounds = array<i64: 1>, scalar_prefetch = 0 : i64, scratch_operands = 0 : i64, tpu.core_type = #tpu.core_type<tc>, window_params = [{transform_indices = @transform_0, window_bounds = array<i64: 32, 128>}, {pipeline_mode = #tpu.pipeline_mode<synchronous>, transform_indices = @transform_1, window_bounds = array<i64: 128, 2560>}, {pipeline_mode = #tpu.pipeline_mode<synchronous>, transform_indices = @transform_2, window_bounds = array<i64: 1, 2560>}, {transform_indices = @transform_3, window_bounds = array<i64: 32, 2560>}]} {
    %c0 = arith.constant 0 : index
    %c0_0 = arith.constant 0 : index
    %0 = vector.load %arg1[%c0, %c0_0] : memref<32x128xf32, #tpu.memory_space<vmem>>, vector<32x128xf32>
    %1 = arith.truncf %0 : vector<32x128xf32> to vector<32x128xbf16>
    %c0_1 = arith.constant 0 : index
    %c0_2 = arith.constant 0 : index
    %2 = vector.load %arg2[%c0_1, %c0_2] : memref<128x2560xbf16, #tpu.memory_space<vmem>>, vector<128x2560xbf16>
    %cst = arith.constant dense<0.000000e+00> : vector<32x2560xf32>
    %3 = tpu.matmul %1, %2, %cst {dimension_numbers = #tpu.dot_dimension_numbers<[1], [0], [0], [1], [0, 0, 1, 1], [], []>} : vector<32x128xbf16>, vector<128x2560xbf16>, vector<32x2560xf32> -> vector<32x2560xf32>
    %c0_3 = arith.constant 0 : index
    %c0_4 = arith.constant 0 : index
    %4 = vector.load %arg3[%c0_3, %c0_4] : memref<1x2560xf32, #tpu.memory_space<vmem>>, vector<1x2560xf32>
    %5 = vector.broadcast %4 : vector<1x2560xf32> to vector<32x2560xf32>
    %6 = arith.addf %3, %5 : vector<32x2560xf32>
    %7 = arith.truncf %6 : vector<32x2560xf32> to vector<32x2560xbf16>
    %c0_5 = arith.constant 0 : index
    %c0_6 = arith.constant 0 : index
    %8 = vector.load %arg4[%c0_5, %c0_6] : memref<32x2560xbf16, #tpu.memory_space<vmem>>, vector<32x2560xbf16>
    tpu.vector_store %arg4[%c0_5, %c0_6], %7 {strides = array<i32>} : memref<32x2560xbf16, #tpu.memory_space<vmem>>, vector<32x2560xbf16>,
    return
  }
  func.func @transform_0(%arg0: i32) -> (i32, i32) {
    %c0_i32 = arith.constant 0 : i32
    %c0_i32_0 = arith.constant 0 : i32
    return %arg0, %c0_i32 : i32, i32
  }
  func.func @transform_1(%arg0: i32) -> (i32, i32) {
    %c0_i32 = arith.constant 0 : i32
    %c0_i32_0 = arith.constant 0 : i32
    %c0_i32_1 = arith.constant 0 : i32
    return %c0_i32, %c0_i32_0 : i32, i32
  }
  func.func @transform_2(%arg0: i32) -> (i32, i32) {
    %c0_i32 = arith.constant 0 : i32
    %c0_i32_0 = arith.constant 0 : i32
    %c0_i32_1 = arith.constant 0 : i32
    return %c0_i32, %c0_i32_0 : i32, i32
  }
  func.func @transform_3(%arg0: i32) -> (i32, i32) {
    %c0_i32 = arith.constant 0 : i32
    %c0_i32_0 = arith.constant 0 : i32
    return %arg0, %c0_i32 : i32, i32
  }
}

</mosaic_0001>

<llo_original>
// kernel: tpu_custom_call.1
$region0: #{tpu_custom_call.1}
  #allocation0 [shape = 'u32[]', space=smem, size = 0x4, offset = 0x4, fixed_abs, tag = 'smem constant byte address 0x4 - core index']
  #allocation1 [shape = 'u32[72,128]{1,0:T(1,128)}', space=vmem, size = 0x9000, scoped, tag = 'internal scratch']
  %s0 = inlined_call_operand.hbm [shape: f32[32,128], index: 0, kind: input, shape index: {}]
  %s1 = inlined_call_operand.hbm [shape: bf16[128,2560], index: 1, kind: input, shape index: {}]
  %s2 = inlined_call_operand.hbm [shape: f32[1,2560], index: 2, kind: input, shape index: {}]
  %s3 = inlined_call_operand.hbm [shape: bf16[32,2560], index: 3, kind: output, shape index: {}]
  %s4 = sld [smem:[#allocation0]]
  $region34: #{tpu_custom_call.1} parent=0
    _
  %s6 = ssub.s32 1, %s4
  %s7 = scalar_select 0, %s6, %s4
  $region1: #{tpu_custom_call.1} parent=0
    #allocation2 [shape = 'u8[16384]{0}', space=vmem, size = 0x4000, scoped, tag = 'input window, operand 0, single buffered']
    #allocation3 [shape = 's32[1]{0}', space=sflag, size = 0x4, scoped, tag = 'scoped memory for tpu_custom_call.1']
    #allocation4 [shape = 's32[1]{0}', space=sflag, size = 0x4, scoped, tag = 'scoped memory for tpu_custom_call.1']
    #allocation5 [shape = 'u8[655360]{0}', space=vmem, size = 0xa0000, scoped, tag = 'input window, operand 1, single buffered']
    #allocation6 [shape = 's32[1]{0}', space=sflag, size = 0x4, scoped, tag = 'scoped memory for tpu_custom_call.1']
    #allocation7 [shape = 'u8[10240]{0}', space=vmem, size = 0x2800, scoped, tag = 'input window, operand 2, single buffered']
    #allocation8 [shape = 'u8[163840]{0}', space=vmem, size = 0x28000, scoped, tag = 'output window, operand 0, single buffered']
    %8 = vsyncpa [#allocation3], 0
    %9 = vsyncpa [#allocation6], 0
    %10 = vsyncpa [#allocation4], 0
    // Predicated region
    $region2: #{tpu_custom_call.1} parent=1 // pred_check
      _
    $region3: #{tpu_custom_call.1} parent=1 // pred_check_branch
      %12 = sbr.rel (0) target = $region5
    $region4: #{tpu_custom_call.1} parent=1 // pred_region
      %14 = vsyncadd [#allocation3], 0
      %s15 = sshll.u32 %s0, 4
      %s16 = int_to_ptr.hbm [resolvable:$true] %s15
      %s17 = sshll.u32 [#allocation2], 4
      %s18 = int_to_ptr.vmem [resolvable:$true] %s17
      %23 = dma.hbm_to_vmem [thread:$0]  %s16, 512, %s18, [#allocation3], 128, 128, 8
    $region5: #{tpu_custom_call.1} parent=1 // pred_fallthru
      _
    // Predicated region
    $region6: #{tpu_custom_call.1} parent=1 // pred_check
      _
    $region7: #{tpu_custom_call.1} parent=1 // pred_check_branch
      %25 = sbr.rel (0) target = $region9
    $region8: #{tpu_custom_call.1} parent=1 // pred_region
      %27 = vsyncadd [#allocation6], 0
      %s28 = sshll.u32 %s1, 4
      %s29 = int_to_ptr.hbm [resolvable:$true] %s28
      %s30 = sshll.u32 [#allocation5], 4
      %s31 = int_to_ptr.vmem [resolvable:$true] %s30
      %36 = dma.hbm_to_vmem [thread:$0]  %s29, 20480, %s31, [#allocation6], 1280, 1280, 80
    $region9: #{tpu_custom_call.1} parent=1 // pred_fallthru
      _
    // Predicated region
    $region10: #{tpu_custom_call.1} parent=1 // pred_check
      _
    $region11: #{tpu_custom_call.1} parent=1 // pred_check_branch
      %38 = sbr.rel (0) target = $region13
    $region12: #{tpu_custom_call.1} parent=1 // pred_region
      %40 = vsyncadd [#allocation6], 0
      %s42 = sshll.u32 %s2, 4
      %s43 = int_to_ptr.hbm [resolvable:$true] %s42
      %s44 = sshll.u32 [#allocation7], 4
      %s45 = int_to_ptr.vmem [resolvable:$true] %s44
      %47 = dma.hbm_to_vmem [thread:$0]  %s43, 320, %s45, [#allocation6]
    $region13: #{tpu_custom_call.1} parent=1 // pred_fallthru
      _
    // Predicated region
    $region14: #{tpu_custom_call.1} parent=1 // pred_check
      _
    $region15: #{tpu_custom_call.1} parent=1 // pred_check_branch
      %49 = sbr.rel (0) target = $region17
    $region16: #{tpu_custom_call.1} parent=1 // pred_region
      %51 = dma.done [#allocation3], 512
    $region17: #{tpu_custom_call.1} parent=1 // pred_fallthru
      _
    // Predicated region
    $region18: #{tpu_custom_call.1} parent=1 // pred_check
      _
    $region19: #{tpu_custom_call.1} parent=1 // pred_check_branch
      %53 = sbr.rel (0) target = $region21
    $region20: #{tpu_custom_call.1} parent=1 // pred_region
      %55 = dma.done [#allocation6], 20480
    $region21: #{tpu_custom_call.1} parent=1 // pred_fallthru
      _
    // Predicated region
    $region22: #{tpu_custom_call.1} parent=1 // pred_check
      _
    $region23: #{tpu_custom_call.1} parent=1 // pred_check_branch
      %57 = sbr.rel (0) target = $region25
    $region24: #{tpu_custom_call.1} parent=1 // pred_region
      %59 = dma.done [#allocation6], 320
    $region25: #{tpu_custom_call.1} parent=1 // pred_fallthru
      _
    %v60 = vld [vmem:[#allocation2] sm:$0xff]
    %v61 = vld [vmem:[#allocation2 + $0x8] sm:$0xff]
    %v62 = vld [vmem:[#allocation2 + $0x10] sm:$0xff]
    %v63 = vld [vmem:[#allocation2 + $0x18] sm:$0xff]
    %v64 = vpack.c.bf16 %v61, %v60
    %v65 = vpack.c.bf16 %v63, %v62
    %v66 = vld [vmem:[#allocation5] sm:$0xff]
    %v67 = vld [vmem:[#allocation5 + $0x8] sm:$0xff]
    %v68 = vld [vmem:[#allocation5 + $0x10] sm:$0xff]
    %v69 = vld [vmem:[#allocation5 + $0x18] sm:$0xff]
    %v70 = vld [vmem:[#allocation5 + $0x20] sm:$0xff]
    %v71 = vld [vmem:[#allocation5 + $0x28] sm:$0xff]
    %v72 = vld [vmem:[#allocation5 + $0x30] sm:$0xff]
    %v73 = vld [vmem:[#allocation5 + $0x38] sm:$0xff]
    %v74 = vld [vmem:[#allocation5 + $0x40] sm:$0xff]
    %v75 = vld [vmem:[#allocation5 + $0x48] sm:$0xff]
    %v76 = vld [vmem:[#allocation5 + $0x50] sm:$0xff]
    %v77 = vld [vmem:[#allocation5 + $0x58] sm:$0xff]
    %v78 = vld [vmem:[#allocation5 + $0x60] sm:$0xff]
    %v79 = vld [vmem:[#allocation5 + $0x68] sm:$0xff]
    %v80 = vld [vmem:[#allocation5 + $0x70] sm:$0xff]
    %v81 = vld [vmem:[#allocation5 + $0x78] sm:$0xff]
    %v82 = vld [vmem:[#allocation5 + $0x80] sm:$0xff]
    %v83 = vld [vmem:[#allocation5 + $0x88] sm:$0xff]
    %v84 = vld [vmem:[#allocation5 + $0x90] sm:$0xff]
    %v85 = vld [vmem:[#allocation5 + $0x98] sm:$0xff]
    %v86 = vld [vmem:[#allocation5 + $0xa0] sm:$0xff]
    %v87 = vld [vmem:[#allocation5 + $0xa8] sm:$0xff]
    %v88 = vld [vmem:[#allocation5 + $0xb0] sm:$0xff]
    %v89 = vld [vmem:[#allocation5 + $0xb8] sm:$0xff]
    %v90 = vld [vmem:[#allocation5 + $0xc0] sm:$0xff]
    %v91 = vld [vmem:[#allocation5 + $0xc8] sm:$0xff]
    %v92 = vld [vmem:[#allocation5 + $0xd0] sm:$0xff]
    %v93 = vld [vmem:[#allocation5 + $0xd8] sm:$0xff]
    %v94 = vld [vmem:[#allocation5 + $0xe0] sm:$0xff]
    %v95 = vld [vmem:[#allocation5 + $0xe8] sm:$0xff]
    %v96 = vld [vmem:[#allocation5 + $0xf0] sm:$0xff]
    %v97 = vld [vmem:[#allocation5 + $0xf8] sm:$0xff]
    %v98 = vld [vmem:[#allocation5 + $0x100] sm:$0xff]
    %v99 = vld [vmem:[#allocation5 + $0x108] sm:$0xff]
    %v100 = vld [vmem:[#allocation5 + $0x110] sm:$0xff]
    %v101 = vld [vmem:[#allocation5 + $0x118] sm:$0xff]
    %v102 = vld [vmem:[#allocation5 + $0x120] sm:$0xff]
    %v103 = vld [vmem:[#allocation5 + $0x128] sm:$0xff]
    %v104 = vld [vmem:[#allocation5 + $0x130] sm:$0xff]
    %v105 = vld [vmem:[#allocation5 + $0x138] sm:$0xff]
    %v106 = vld [vmem:[#allocation5 + $0x140] sm:$0xff]
    %v107 = vld [vmem:[#allocation5 + $0x148] sm:$0xff]
    %v108 = vld [vmem:[#allocation5 + $0x150] sm:$0xff]
    %v109 = vld [vmem:[#allocation5 + $0x158] sm:$0xff]
    %v110 = vld [vmem:[#allocation5 + $0x160] sm:$0xff]
    %v111 = vld [vmem:[#allocation5 + $0x168] sm:$0xff]
    %v112 = vld [vmem:[#allocation5 + $0x170] sm:$0xff]
    %v113 = vld [vmem:[#allocation5 + $0x178] sm:$0xff]
    %v114 = vld [vmem:[#allocation5 + $0x180] sm:$0xff]
    %v115 = vld [vmem:[#allocation5 + $0x188] sm:$0xff]
    %v116 = vld [vmem:[#allocation5 + $0x190] sm:$0xff]
    %v117 = vld [vmem:[#allocation5 + $0x198] sm:$0xff]
    %v118 = vld [vmem:[#allocation5 + $0x1a0] sm:$0xff]
    %v119 = vld [vmem:[#allocation5 + $0x1a8] sm:$0xff]
    %v120 = vld [vmem:[#allocation5 + $0x1b0] sm:$0xff]
    %v121 = vld [vmem:[#allocation5 + $0x1b8] sm:$0xff]
    %v122 = vld [vmem:[#allocation5 + $0x1c0] sm:$0xff]
    %v123 = vld [vmem:[#allocation5 + $0x1c8] sm:$0xff]
    %v124 = vld [vmem:[#allocation5 + $0x1d0] sm:$0xff]
    %v125 = vld [vmem:[#allocation5 + $0x1d8] sm:$0xff]
    %v126 = vld [vmem:[#allocation5 + $0x1e0] sm:$0xff]
    %v127 = vld [vmem:[#allocation5 + $0x1e8] sm:$0xff]
    %v128 = vld [vmem:[#allocation5 + $0x1f0] sm:$0xff]
    %v129 = vld [vmem:[#allocation5 + $0x1f8] sm:$0xff]
    %v130 = vld [vmem:[#allocation5 + $0x200] sm:$0xff]
    %v131 = vld [vmem:[#allocation5 + $0x208] sm:$0xff]
    %v132 = vld [vmem:[#allocation5 + $0x210] sm:$0xff]
    %v133 = vld [vmem:[#allocation5 + $0x218] sm:$0xff]
    %v134 = vld [vmem:[#allocation5 + $0x220] sm:$0xff]
    %v135 = vld [vmem:[#allocation5 + $0x228] sm:$0xff]
    %v136 = vld [vmem:[#allocation5 + $0x230] sm:$0xff]
    %v137 = vld [vmem:[#allocation5 + $0x238] sm:$0xff]
    %v138 = vld [vmem:[#allocation5 + $0x240] sm:$0xff]
    %v139 = vld [vmem:[#allocation5 + $0x248] sm:$0xff]
    %v140 = vld [vmem:[#allocation5 + $0x250] sm:$0xff]
    %v141 = vld [vmem:[#allocation5 + $0x258] sm:$0xff]
    %v142 = vld [vmem:[#allocation5 + $0x260] sm:$0xff]
    %v143 = vld [vmem:[#allocation5 + $0x268] sm:$0xff]
    %v144 = vld [vmem:[#allocation5 + $0x270] sm:$0xff]
    %v145 = vld [vmem:[#allocation5 + $0x278] sm:$0xff]
    %v146 = vld [vmem:[#allocation5 + $0x280] sm:$0xff]
    %v147 = vld [vmem:[#allocation5 + $0x288] sm:$0xff]
    %v148 = vld [vmem:[#allocation5 + $0x290] sm:$0xff]
    %v149 = vld [vmem:[#allocation5 + $0x298] sm:$0xff]
    %v150 = vld [vmem:[#allocation5 + $0x2a0] sm:$0xff]
    %v151 = vld [vmem:[#allocation5 + $0x2a8] sm:$0xff]
    %v152 = vld [vmem:[#allocation5 + $0x2b0] sm:$0xff]
    %v153 = vld [vmem:[#allocation5 + $0x2b8] sm:$0xff]
    %v154 = vld [vmem:[#allocation5 + $0x2c0] sm:$0xff]
    %v155 = vld [vmem:[#allocation5 + $0x2c8] sm:$0xff]
    %v156 = vld [vmem:[#allocation5 + $0x2d0] sm:$0xff]
    %v157 = vld [vmem:[#allocation5 + $0x2d8] sm:$0xff]
    %v158 = vld [vmem:[#allocation5 + $0x2e0] sm:$0xff]
    %v159 = vld [vmem:[#allocation5 + $0x2e8] sm:$0xff]
    %v160 = vld [vmem:[#allocation5 + $0x2f0] sm:$0xff]
    %v161 = vld [vmem:[#allocation5 + $0x2f8] sm:$0xff]
    %v162 = vld [vmem:[#allocation5 + $0x300] sm:$0xff]
    %v163 = vld [vmem:[#allocation5 + $0x308] sm:$0xff]
    %v164 = vld [vmem:[#allocation5 + $0x310] sm:$0xff]
    %v165 = vld [vmem:[#allocation5 + $0x318] sm:$0xff]
    %v166 = vld [vmem:[#allocation5 + $0x320] sm:$0xff]
    %v167 = vld [vmem:[#allocation5 + $0x328] sm:$0xff]
    %v168 = vld [vmem:[#allocation5 + $0x330] sm:$0xff]
    %v169 = vld [vmem:[#allocation5 + $0x338] sm:$0xff]
    %v170 = vld [vmem:[#allocation5 + $0x340] sm:$0xff]
    %v171 = vld [vmem:[#allocation5 + $0x348] sm:$0xff]
    %v172 = vld [vmem:[#allocation5 + $0x350] sm:$0xff]
    %v173 = vld [vmem:[#allocation5 + $0x358] sm:$0xff]
    %v174 = vld [vmem:[#allocation5 + $0x360] sm:$0xff]
    %v175 = vld [vmem:[#allocation5 + $0x368] sm:$0xff]
    %v176 = vld [vmem:[#allocation5 + $0x370] sm:$0xff]
    %v177 = vld [vmem:[#allocation5 + $0x378] sm:$0xff]
    %v178 = vld [vmem:[#allocation5 + $0x380] sm:$0xff]
    %v179 = vld [vmem:[#allocation5 + $0x388] sm:$0xff]
    %v180 = vld [vmem:[#allocation5 + $0x390] sm:$0xff]
    %v181 = vld [vmem:[#allocation5 + $0x398] sm:$0xff]
    %v182 = vld [vmem:[#allocation5 + $0x3a0] sm:$0xff]
    %v183 = vld [vmem:[#allocation5 + $0x3a8] sm:$0xff]
    %v184 = vld [vmem:[#allocation5 + $0x3b0] sm:$0xff]
    %v185 = vld [vmem:[#allocation5 + $0x3b8] sm:$0xff]
    %v186 = vld [vmem:[#allocation5 + $0x3c0] sm:$0xff]
    %v187 = vld [vmem:[#allocation5 + $0x3c8] sm:$0xff]
    %v188 = vld [vmem:[#allocation5 + $0x3d0] sm:$0xff]
    %v189 = vld [vmem:[#allocation5 + $0x3d8] sm:$0xff]
    %v190 = vld [vmem:[#allocation5 + $0x3e0] sm:$0xff]
    %v191 = vld [vmem:[#allocation5 + $0x3e8] sm:$0xff]
    %v192 = vld [vmem:[#allocation5 + $0x3f0] sm:$0xff]
    %v193 = vld [vmem:[#allocation5 + $0x3f8] sm:$0xff]
    %v194 = vld [vmem:[#allocation5 + $0x400] sm:$0xff]
    %v195 = vld [vmem:[#allocation5 + $0x408] sm:$0xff]
    %v196 = vld [vmem:[#allocation5 + $0x410] sm:$0xff]
    %v197 = vld [vmem:[#allocation5 + $0x418] sm:$0xff]
    %v198 = vld [vmem:[#allocation5 + $0x420] sm:$0xff]
    %v199 = vld [vmem:[#allocation5 + $0x428] sm:$0xff]
    %v200 = vld [vmem:[#allocation5 + $0x430] sm:$0xff]
    %v201 = vld [vmem:[#allocation5 + $0x438] sm:$0xff]
    %v202 = vld [vmem:[#allocation5 + $0x440] sm:$0xff]
    %v203 = vld [vmem:[#allocation5 + $0x448] sm:$0xff]
    %v204 = vld [vmem:[#allocation5 + $0x450] sm:$0xff]
    %v205 = vld [vmem:[#allocation5 + $0x458] sm:$0xff]
    %v206 = vld [vmem:[#allocation5 + $0x460] sm:$0xff]
    %v207 = vld [vmem:[#allocation5 + $0x468] sm:$0xff]
    %v208 = vld [vmem:[#allocation5 + $0x470] sm:$0xff]
    %v209 = vld [vmem:[#allocation5 + $0x478] sm:$0xff]
    %v210 = vld [vmem:[#allocation5 + $0x480] sm:$0xff]
    %v211 = vld [vmem:[#allocation5 + $0x488] sm:$0xff]
    %v212 = vld [vmem:[#allocation5 + $0x490] sm:$0xff]
    %v213 = vld [vmem:[#allocation5 + $0x498] sm:$0xff]
    %v214 = vld [vmem:[#allocation5 + $0x4a0] sm:$0xff]
    %v215 = vld [vmem:[#allocation5 + $0x4a8] sm:$0xff]
    %v216 = vld [vmem:[#allocation5 + $0x4b0] sm:$0xff]
    %v217 = vld [vmem:[#allocation5 + $0x4b8] sm:$0xff]
    %v218 = vld [vmem:[#allocation5 + $0x4c0] sm:$0xff]
    %v219 = vld [vmem:[#allocation5 + $0x4c8] sm:$0xff]
    %v220 = vld [vmem:[#allocation5 + $0x4d0] sm:$0xff]
    %v221 = vld [vmem:[#allocation5 + $0x4d8] sm:$0xff]
    %v222 = vld [vmem:[#allocation5 + $0x4e0] sm:$0xff]
    %v223 = vld [vmem:[#allocation5 + $0x4e8] sm:$0xff]
    %v224 = vld [vmem:[#allocation5 + $0x4f0] sm:$0xff]
    %v225 = vld [vmem:[#allocation5 + $0x4f8] sm:$0xff]
    %v226 = vld [vmem:[#allocation7] sm:$0xff]
    %v227 = vld [vmem:[#allocation7 + $0x8] sm:$0xff]
    %v228 = vld [vmem:[#allocation7 + $0x10] sm:$0xf]
    %v232 = vperm.slane %v226, 0
    %v233 = vperm.slane %v226, 1
    %v234 = vperm.slane %v226, 2
    %v235 = vperm.slane %v226, 3
    %v236 = vperm.slane %v226, 4
    %v237 = vperm.slane %v226, 5
    %v238 = vperm.slane %v226, 6
    %v239 = vperm.slane %v226, 7
    %v240 = vperm.slane %v227, 0
    %v241 = vperm.slane %v227, 1
    %v242 = vperm.slane %v227, 2
    %v243 = vperm.slane %v227, 3
    %v244 = vperm.slane %v227, 4
    %v245 = vperm.slane %v227, 5
    %v246 = vperm.slane %v227, 6
    %v247 = vperm.slane %v227, 7
    %v248 = vperm.slane %v228, 0
    %v249 = vperm.slane %v228, 1
    %v250 = vperm.slane %v228, 2
    %v251 = vperm.slane %v228, 3
    %v432 = vunpack.c.l.b16 %v66
    %v433 = vunpack.c.h.b16 %v66
    %v434 = vunpack.c.l.b16 %v67
    %v435 = vunpack.c.h.b16 %v67
    %v436 = vunpack.c.l.b16 %v68
    %v437 = vunpack.c.h.b16 %v68
    %v438 = vunpack.c.l.b16 %v69
    %v439 = vunpack.c.h.b16 %v69
    %v440 = vunpack.c.l.b16 %v70
    %v441 = vunpack.c.h.b16 %v70
    %v442 = vunpack.c.l.b16 %v71
    %v443 = vunpack.c.h.b16 %v71
    %v444 = vunpack.c.l.b16 %v72
    %v445 = vunpack.c.h.b16 %v72
    %v446 = vunpack.c.l.b16 %v73
    %v447 = vunpack.c.h.b16 %v73
    %v448 = vunpack.c.l.b16 %v74
    %v449 = vunpack.c.h.b16 %v74
    %v450 = vunpack.c.l.b16 %v75
    %v451 = vunpack.c.h.b16 %v75
    %v452 = vunpack.c.l.b16 %v76
    %v453 = vunpack.c.h.b16 %v76
    %v454 = vunpack.c.l.b16 %v77
    %v455 = vunpack.c.h.b16 %v77
    %v456 = vunpack.c.l.b16 %v78
    %v457 = vunpack.c.h.b16 %v78
    %v458 = vunpack.c.l.b16 %v79
    %v459 = vunpack.c.h.b16 %v79
    %v460 = vunpack.c.l.b16 %v80
    %v461 = vunpack.c.h.b16 %v80
    %v462 = vunpack.c.l.b16 %v81
    %v463 = vunpack.c.h.b16 %v81
    %v464 = vunpack.c.l.b16 %v82
    %v465 = vunpack.c.h.b16 %v82
    %v466 = vunpack.c.l.b16 %v83
    %v467 = vunpack.c.h.b16 %v83
    %v468 = vunpack.c.l.b16 %v84
    %v469 = vunpack.c.h.b16 %v84
    %v470 = vunpack.c.l.b16 %v85
    %v471 = vunpack.c.h.b16 %v85
    %v472 = vunpack.c.l.b16 %v86
    %v473 = vunpack.c.h.b16 %v86
    %v474 = vunpack.c.l.b16 %v87
    %v475 = vunpack.c.h.b16 %v87
    %v476 = vunpack.c.l.b16 %v88
    %v477 = vunpack.c.h.b16 %v88
    %v478 = vunpack.c.l.b16 %v89
    %v479 = vunpack.c.h.b16 %v89
    %v480 = vunpack.c.l.b16 %v90
    %v481 = vunpack.c.h.b16 %v90
    %v482 = vunpack.c.l.b16 %v91
    %v483 = vunpack.c.h.b16 %v91
    %v484 = vunpack.c.l.b16 %v92
    %v485 = vunpack.c.h.b16 %v92
    %v486 = vunpack.c.l.b16 %v93
    %v487 = vunpack.c.h.b16 %v93
    %v488 = vunpack.c.l.b16 %v94
    %v489 = vunpack.c.h.b16 %v94
    %v490 = vunpack.c.l.b16 %v95
    %v491 = vunpack.c.h.b16 %v95
    %v492 = vunpack.c.l.b16 %v96
    %v493 = vunpack.c.h.b16 %v96
    %v494 = vunpack.c.l.b16 %v97
    %v495 = vunpack.c.h.b16 %v97
    %v496 = vunpack.c.l.b16 %v98
    %v497 = vunpack.c.h.b16 %v98
    %v498 = vunpack.c.l.b16 %v99
    %v499 = vunpack.c.h.b16 %v99
    %v500 = vunpack.c.l.b16 %v100
    %v501 = vunpack.c.h.b16 %v100
    %v502 = vunpack.c.l.b16 %v101
    %v503 = vunpack.c.h.b16 %v101
    %v504 = vunpack.c.l.b16 %v102
    %v505 = vunpack.c.h.b16 %v102
    %v506 = vunpack.c.l.b16 %v103
    %v507 = vunpack.c.h.b16 %v103
    %v508 = vunpack.c.l.b16 %v104
    %v509 = vunpack.c.h.b16 %v104
    %v510 = vunpack.c.l.b16 %v105
    %v511 = vunpack.c.h.b16 %v105
    %v512 = vunpack.c.l.b16 %v106
    %v513 = vunpack.c.h.b16 %v106
    %v514 = vunpack.c.l.b16 %v107
    %v515 = vunpack.c.h.b16 %v107
    %v516 = vunpack.c.l.b16 %v108
    %v517 = vunpack.c.h.b16 %v108
    %v518 = vunpack.c.l.b16 %v109
    %v519 = vunpack.c.h.b16 %v109
    %v520 = vunpack.c.l.b16 %v110
    %v521 = vunpack.c.h.b16 %v110
    %v522 = vunpack.c.l.b16 %v111
    %v523 = vunpack.c.h.b16 %v111
    %v524 = vunpack.c.l.b16 %v112
    %v525 = vunpack.c.h.b16 %v112
    %v526 = vunpack.c.l.b16 %v113
    %v527 = vunpack.c.h.b16 %v113
    %v528 = vunpack.c.l.b16 %v114
    %v529 = vunpack.c.h.b16 %v114
    %v530 = vunpack.c.l.b16 %v115
    %v531 = vunpack.c.h.b16 %v115
    %v532 = vunpack.c.l.b16 %v116
    %v533 = vunpack.c.h.b16 %v116
    %v534 = vunpack.c.l.b16 %v117
    %v535 = vunpack.c.h.b16 %v117
    %v536 = vunpack.c.l.b16 %v118
    %v537 = vunpack.c.h.b16 %v118
    %v538 = vunpack.c.l.b16 %v119
    %v539 = vunpack.c.h.b16 %v119
    %v540 = vunpack.c.l.b16 %v120
    %v541 = vunpack.c.h.b16 %v120
    %v542 = vunpack.c.l.b16 %v121
    %v543 = vunpack.c.h.b16 %v121
    %v544 = vunpack.c.l.b16 %v122
    %v545 = vunpack.c.h.b16 %v122
    %v546 = vunpack.c.l.b16 %v123
    %v547 = vunpack.c.h.b16 %v123
    %v548 = vunpack.c.l.b16 %v124
    %v549 = vunpack.c.h.b16 %v124
    %v550 = vunpack.c.l.b16 %v125
    %v551 = vunpack.c.h.b16 %v125
    %v552 = vunpack.c.l.b16 %v126
    %v553 = vunpack.c.h.b16 %v126
    %v554 = vunpack.c.l.b16 %v127
    %v555 = vunpack.c.h.b16 %v127
    %v556 = vunpack.c.l.b16 %v128
    %v557 = vunpack.c.h.b16 %v128
    %v558 = vunpack.c.l.b16 %v129
    %v559 = vunpack.c.h.b16 %v129
    %v560 = vunpack.c.l.b16 %v130
    %v561 = vunpack.c.h.b16 %v130
    %v562 = vunpack.c.l.b16 %v131
    %v563 = vunpack.c.h.b16 %v131
    %v564 = vunpack.c.l.b16 %v132
    %v565 = vunpack.c.h.b16 %v132
    %v566 = vunpack.c.l.b16 %v133
    %v567 = vunpack.c.h.b16 %v133
    %v568 = vunpack.c.l.b16 %v134
    %v569 = vunpack.c.h.b16 %v134
    %v570 = vunpack.c.l.b16 %v135
    %v571 = vunpack.c.h.b16 %v135
    %v572 = vunpack.c.l.b16 %v136
    %v573 = vunpack.c.h.b16 %v136
    %v574 = vunpack.c.l.b16 %v137
    %v575 = vunpack.c.h.b16 %v137
    %v576 = vunpack.c.l.b16 %v138
    %v577 = vunpack.c.h.b16 %v138
    %v578 = vunpack.c.l.b16 %v139
    %v579 = vunpack.c.h.b16 %v139
    %v580 = vunpack.c.l.b16 %v140
    %v581 = vunpack.c.h.b16 %v140
    %v582 = vunpack.c.l.b16 %v141
    %v583 = vunpack.c.h.b16 %v141
    %v584 = vunpack.c.l.b16 %v142
    %v585 = vunpack.c.h.b16 %v142
    %v586 = vunpack.c.l.b16 %v143
    %v587 = vunpack.c.h.b16 %v143
    %v588 = vunpack.c.l.b16 %v144
    %v589 = vunpack.c.h.b16 %v144
    %v590 = vunpack.c.l.b16 %v145
    %v591 = vunpack.c.h.b16 %v145
    %v592 = vunpack.c.l.b16 %v146
    %v593 = vunpack.c.h.b16 %v146
    %v594 = vunpack.c.l.b16 %v147
    %v595 = vunpack.c.h.b16 %v147
    %v596 = vunpack.c.l.b16 %v148
    %v597 = vunpack.c.h.b16 %v148
    %v598 = vunpack.c.l.b16 %v149
    %v599 = vunpack.c.h.b16 %v149
    %v600 = vunpack.c.l.b16 %v150
    %v601 = vunpack.c.h.b16 %v150
    %v602 = vunpack.c.l.b16 %v151
    %v603 = vunpack.c.h.b16 %v151
    %v604 = vunpack.c.l.b16 %v152
    %v605 = vunpack.c.h.b16 %v152
    %v606 = vunpack.c.l.b16 %v153
    %v607 = vunpack.c.h.b16 %v153
    %v608 = vunpack.c.l.b16 %v154
    %v609 = vunpack.c.h.b16 %v154
    %v610 = vunpack.c.l.b16 %v155
    %v611 = vunpack.c.h.b16 %v155
    %v612 = vunpack.c.l.b16 %v156
    %v613 = vunpack.c.h.b16 %v156
    %v614 = vunpack.c.l.b16 %v157
    %v615 = vunpack.c.h.b16 %v157
    %v616 = vunpack.c.l.b16 %v158
    %v617 = vunpack.c.h.b16 %v158
    %v618 = vunpack.c.l.b16 %v159
    %v619 = vunpack.c.h.b16 %v159
    %v620 = vunpack.c.l.b16 %v160
    %v621 = vunpack.c.h.b16 %v160
    %v622 = vunpack.c.l.b16 %v161
    %v623 = vunpack.c.h.b16 %v161
    %v624 = vunpack.c.l.b16 %v162
    %v625 = vunpack.c.h.b16 %v162
    %v626 = vunpack.c.l.b16 %v163
    %v627 = vunpack.c.h.b16 %v163
    %v628 = vunpack.c.l.b16 %v164
    %v629 = vunpack.c.h.b16 %v164
    %v630 = vunpack.c.l.b16 %v165
    %v631 = vunpack.c.h.b16 %v165
    %v632 = vunpack.c.l.b16 %v166
    %v633 = vunpack.c.h.b16 %v166
    %v634 = vunpack.c.l.b16 %v167
    %v635 = vunpack.c.h.b16 %v167
    %v636 = vunpack.c.l.b16 %v168
    %v637 = vunpack.c.h.b16 %v168
    %v638 = vunpack.c.l.b16 %v169
    %v639 = vunpack.c.h.b16 %v169
    %v640 = vunpack.c.l.b16 %v170
    %v641 = vunpack.c.h.b16 %v170
    %v642 = vunpack.c.l.b16 %v171
    %v643 = vunpack.c.h.b16 %v171
    %v644 = vunpack.c.l.b16 %v172
    %v645 = vunpack.c.h.b16 %v172
    %v646 = vunpack.c.l.b16 %v173
    %v647 = vunpack.c.h.b16 %v173
    %v648 = vunpack.c.l.b16 %v174
    %v649 = vunpack.c.h.b16 %v174
    %v650 = vunpack.c.l.b16 %v175
    %v651 = vunpack.c.h.b16 %v175
    %v652 = vunpack.c.l.b16 %v176
    %v653 = vunpack.c.h.b16 %v176
    %v654 = vunpack.c.l.b16 %v177
    %v655 = vunpack.c.h.b16 %v177
    %v656 = vunpack.c.l.b16 %v178
    %v657 = vunpack.c.h.b16 %v178
    %v658 = vunpack.c.l.b16 %v179
    %v659 = vunpack.c.h.b16 %v179
    %v660 = vunpack.c.l.b16 %v180
    %v661 = vunpack.c.h.b16 %v180
    %v662 = vunpack.c.l.b16 %v181
    %v663 = vunpack.c.h.b16 %v181
    %v664 = vunpack.c.l.b16 %v182
    %v665 = vunpack.c.h.b16 %v182
    %v666 = vunpack.c.l.b16 %v183
    %v667 = vunpack.c.h.b16 %v183
    %v668 = vunpack.c.l.b16 %v184
    %v669 = vunpack.c.h.b16 %v184
    %v670 = vunpack.c.l.b16 %v185
    %v671 = vunpack.c.h.b16 %v185
    %v672 = vunpack.c.l.b16 %v186
    %v673 = vunpack.c.h.b16 %v186
    %v674 = vunpack.c.l.b16 %v187
    %v675 = vunpack.c.h.b16 %v187
    %v676 = vunpack.c.l.b16 %v188
    %v677 = vunpack.c.h.b16 %v188
    %v678 = vunpack.c.l.b16 %v189
    %v679 = vunpack.c.h.b16 %v189
    %v680 = vunpack.c.l.b16 %v190
    %v681 = vunpack.c.h.b16 %v190
    %v682 = vunpack.c.l.b16 %v191
    %v683 = vunpack.c.h.b16 %v191
    %v684 = vunpack.c.l.b16 %v192
    %v685 = vunpack.c.h.b16 %v192
    %v686 = vunpack.c.l.b16 %v193
    %v687 = vunpack.c.h.b16 %v193
    %v688 = vunpack.c.l.b16 %v194
    %v689 = vunpack.c.h.b16 %v194
    %v690 = vunpack.c.l.b16 %v195
    %v691 = vunpack.c.h.b16 %v195
    %v692 = vunpack.c.l.b16 %v196
    %v693 = vunpack.c.h.b16 %v196
    %v694 = vunpack.c.l.b16 %v197
    %v695 = vunpack.c.h.b16 %v197
    %v696 = vunpack.c.l.b16 %v198
    %v697 = vunpack.c.h.b16 %v198
    %v698 = vunpack.c.l.b16 %v199
    %v699 = vunpack.c.h.b16 %v199
    %v700 = vunpack.c.l.b16 %v200
    %v701 = vunpack.c.h.b16 %v200
    %v702 = vunpack.c.l.b16 %v201
    %v703 = vunpack.c.h.b16 %v201
    %v704 = vunpack.c.l.b16 %v202
    %v705 = vunpack.c.h.b16 %v202
    %v706 = vunpack.c.l.b16 %v203
    %v707 = vunpack.c.h.b16 %v203
    %v708 = vunpack.c.l.b16 %v204
    %v709 = vunpack.c.h.b16 %v204
    %v710 = vunpack.c.l.b16 %v205
    %v711 = vunpack.c.h.b16 %v205
    %v712 = vunpack.c.l.b16 %v206
    %v713 = vunpack.c.h.b16 %v206
    %v714 = vunpack.c.l.b16 %v207
    %v715 = vunpack.c.h.b16 %v207
    %v716 = vunpack.c.l.b16 %v208
    %v717 = vunpack.c.h.b16 %v208
    %v718 = vunpack.c.l.b16 %v209
    %v719 = vunpack.c.h.b16 %v209
    %v720 = vunpack.c.l.b16 %v210
    %v721 = vunpack.c.h.b16 %v210
    %v722 = vunpack.c.l.b16 %v211
    %v723 = vunpack.c.h.b16 %v211
    %v724 = vunpack.c.l.b16 %v212
    %v725 = vunpack.c.h.b16 %v212
    %v726 = vunpack.c.l.b16 %v213
    %v727 = vunpack.c.h.b16 %v213
    %v728 = vunpack.c.l.b16 %v214
    %v729 = vunpack.c.h.b16 %v214
    %v730 = vunpack.c.l.b16 %v215
    %v731 = vunpack.c.h.b16 %v215
    %v732 = vunpack.c.l.b16 %v216
    %v733 = vunpack.c.h.b16 %v216
    %v734 = vunpack.c.l.b16 %v217
    %v735 = vunpack.c.h.b16 %v217
    %v736 = vunpack.c.l.b16 %v218
    %v737 = vunpack.c.h.b16 %v218
    %v738 = vunpack.c.l.b16 %v219
    %v739 = vunpack.c.h.b16 %v219
    %v740 = vunpack.c.l.b16 %v220
    %v741 = vunpack.c.h.b16 %v220
    %v742 = vunpack.c.l.b16 %v221
    %v743 = vunpack.c.h.b16 %v221
    %v744 = vunpack.c.l.b16 %v222
    %v745 = vunpack.c.h.b16 %v222
    %v746 = vunpack.c.l.b16 %v223
    %v747 = vunpack.c.h.b16 %v223
    %v748 = vunpack.c.l.b16 %v224
    %v749 = vunpack.c.h.b16 %v224
    %v750 = vunpack.c.l.b16 %v225
    %v751 = vunpack.c.h.b16 %v225
    %v752 = vpack.c.b16 %v452, %v432
    %v753 = vpack.c.b16 %v453, %v433
    %v754 = vpack.c.b16 %v454, %v434
    %v755 = vpack.c.b16 %v455, %v435
    %v756 = vpack.c.b16 %v456, %v436
    %v757 = vpack.c.b16 %v457, %v437
    %v758 = vpack.c.b16 %v458, %v438
    %v759 = vpack.c.b16 %v459, %v439
    %v760 = vpack.c.b16 %v460, %v440
    %v761 = vpack.c.b16 %v461, %v441
    %v762 = vpack.c.b16 %v462, %v442
    %v763 = vpack.c.b16 %v463, %v443
    %v764 = vpack.c.b16 %v464, %v444
    %v765 = vpack.c.b16 %v465, %v445
    %v766 = vpack.c.b16 %v466, %v446
    %v767 = vpack.c.b16 %v467, %v447
    %v768 = vpack.c.b16 %v468, %v448
    %v769 = vpack.c.b16 %v469, %v449
    %v770 = vpack.c.b16 %v470, %v450
    %v771 = vpack.c.b16 %v471, %v451
    %v772 = vpack.c.b16 %v492, %v472
    %v773 = vpack.c.b16 %v493, %v473
    %v774 = vpack.c.b16 %v494, %v474
    %v775 = vpack.c.b16 %v495, %v475
    %v776 = vpack.c.b16 %v496, %v476
    %v777 = vpack.c.b16 %v497, %v477
    %v778 = vpack.c.b16 %v498, %v478
    %v779 = vpack.c.b16 %v499, %v479
    %v780 = vpack.c.b16 %v500, %v480
    %v781 = vpack.c.b16 %v501, %v481
    %v782 = vpack.c.b16 %v502, %v482
    %v783 = vpack.c.b16 %v503, %v483
    %v784 = vpack.c.b16 %v504, %v484
    %v785 = vpack.c.b16 %v505, %v485
    %v786 = vpack.c.b16 %v506, %v486
    %v787 = vpack.c.b16 %v507, %v487
    %v788 = vpack.c.b16 %v508, %v488
    %v789 = vpack.c.b16 %v509, %v489
    %v790 = vpack.c.b16 %v510, %v490
    %v791 = vpack.c.b16 %v511, %v491
    %v792 = vpack.c.b16 %v532, %v512
    %v793 = vpack.c.b16 %v533, %v513
    %v794 = vpack.c.b16 %v534, %v514
    %v795 = vpack.c.b16 %v535, %v515
    %v796 = vpack.c.b16 %v536, %v516
    %v797 = vpack.c.b16 %v537, %v517
    %v798 = vpack.c.b16 %v538, %v518
    %v799 = vpack.c.b16 %v539, %v519
    %v800 = vpack.c.b16 %v540, %v520
    %v801 = vpack.c.b16 %v541, %v521
    %v802 = vpack.c.b16 %v542, %v522
    %v803 = vpack.c.b16 %v543, %v523
    %v804 = vpack.c.b16 %v544, %v524
    %v805 = vpack.c.b16 %v545, %v525
    %v806 = vpack.c.b16 %v546, %v526
    %v807 = vpack.c.b16 %v547, %v527
    %v808 = vpack.c.b16 %v548, %v528
    %v809 = vpack.c.b16 %v549, %v529
    %v810 = vpack.c.b16 %v550, %v530
    %v811 = vpack.c.b16 %v551, %v531
    %v812 = vpack.c.b16 %v572, %v552
    %v813 = vpack.c.b16 %v573, %v553
    %v814 = vpack.c.b16 %v574, %v554
    %v815 = vpack.c.b16 %v575, %v555
    %v816 = vpack.c.b16 %v576, %v556
    %v817 = vpack.c.b16 %v577, %v557
    %v818 = vpack.c.b16 %v578, %v558
    %v819 = vpack.c.b16 %v579, %v559
    %v820 = vpack.c.b16 %v580, %v560
    %v821 = vpack.c.b16 %v581, %v561
    %v822 = vpack.c.b16 %v582, %v562
    %v823 = vpack.c.b16 %v583, %v563
    %v824 = vpack.c.b16 %v584, %v564
    %v825 = vpack.c.b16 %v585, %v565
    %v826 = vpack.c.b16 %v586, %v566
    %v827 = vpack.c.b16 %v587, %v567
    %v828 = vpack.c.b16 %v588, %v568
    %v829 = vpack.c.b16 %v589, %v569
    %v830 = vpack.c.b16 %v590, %v570
    %v831 = vpack.c.b16 %v591, %v571
    %v832 = vpack.c.b16 %v612, %v592
    %v833 = vpack.c.b16 %v613, %v593
    %v834 = vpack.c.b16 %v614, %v594
    %v835 = vpack.c.b16 %v615, %v595
    %v836 = vpack.c.b16 %v616, %v596
    %v837 = vpack.c.b16 %v617, %v597
    %v838 = vpack.c.b16 %v618, %v598
    %v839 = vpack.c.b16 %v619, %v599
    %v840 = vpack.c.b16 %v620, %v600
    %v841 = vpack.c.b16 %v621, %v601
    %v842 = vpack.c.b16 %v622, %v602
    %v843 = vpack.c.b16 %v623, %v603
    %v844 = vpack.c.b16 %v624, %v604
    %v845 = vpack.c.b16 %v625, %v605
    %v846 = vpack.c.b16 %v626, %v606
    %v847 = vpack.c.b16 %v627, %v607
    %v848 = vpack.c.b16 %v628, %v608
    %v849 = vpack.c.b16 %v629, %v609
    %v850 = vpack.c.b16 %v630, %v610
    %v851 = vpack.c.b16 %v631, %v611
    %v852 = vpack.c.b16 %v652, %v632
    %v853 = vpack.c.b16 %v653, %v633
    %v854 = vpack.c.b16 %v654, %v634
    %v855 = vpack.c.b16 %v655, %v635
    %v856 = vpack.c.b16 %v656, %v636
    %v857 = vpack.c.b16 %v657, %v637
    %v858 = vpack.c.b16 %v658, %v638
    %v859 = vpack.c.b16 %v659, %v639
    %v860 = vpack.c.b16 %v660, %v640
    %v861 = vpack.c.b16 %v661, %v641
    %v862 = vpack.c.b16 %v662, %v642
    %v863 = vpack.c.b16 %v663, %v643
    %v864 = vpack.c.b16 %v664, %v644
    %v865 = vpack.c.b16 %v665, %v645
    %v866 = vpack.c.b16 %v666, %v646
    %v867 = vpack.c.b16 %v667, %v647
    %v868 = vpack.c.b16 %v668, %v648
    %v869 = vpack.c.b16 %v669, %v649
    %v870 = vpack.c.b16 %v670, %v650
    %v871 = vpack.c.b16 %v671, %v651
    %v872 = vpack.c.b16 %v692, %v672
    %v873 = vpack.c.b16 %v693, %v673
    %v874 = vpack.c.b16 %v694, %v674
    %v875 = vpack.c.b16 %v695, %v675
    %v876 = vpack.c.b16 %v696, %v676
    %v877 = vpack.c.b16 %v697, %v677
    %v878 = vpack.c.b16 %v698, %v678
    %v879 = vpack.c.b16 %v699, %v679
    %v880 = vpack.c.b16 %v700, %v680
    %v881 = vpack.c.b16 %v701, %v681
    %v882 = vpack.c.b16 %v702, %v682
    %v883 = vpack.c.b16 %v703, %v683
    %v884 = vpack.c.b16 %v704, %v684
    %v885 = vpack.c.b16 %v705, %v685
    %v886 = vpack.c.b16 %v706, %v686
    %v887 = vpack.c.b16 %v707, %v687
    %v888 = vpack.c.b16 %v708, %v688
    %v889 = vpack.c.b16 %v709, %v689
    %v890 = vpack.c.b16 %v710, %v690
    %v891 = vpack.c.b16 %v711, %v691
    %v892 = vpack.c.b16 %v732, %v712
    %v893 = vpack.c.b16 %v733, %v713
    %v894 = vpack.c.b16 %v734, %v714
    %v895 = vpack.c.b16 %v735, %v715
    %v896 = vpack.c.b16 %v736, %v716
    %v897 = vpack.c.b16 %v737, %v717
    %v898 = vpack.c.b16 %v738, %v718
    %v899 = vpack.c.b16 %v739, %v719
    %v900 = vpack.c.b16 %v740, %v720
    %v901 = vpack.c.b16 %v741, %v721
    %v902 = vpack.c.b16 %v742, %v722
    %v903 = vpack.c.b16 %v743, %v723
    %v904 = vpack.c.b16 %v744, %v724
    %v905 = vpack.c.b16 %v745, %v725
    %v906 = vpack.c.b16 %v746, %v726
    %v907 = vpack.c.b16 %v747, %v727
    %v908 = vpack.c.b16 %v748, %v728
    %v909 = vpack.c.b16 %v749, %v729
    %v910 = vpack.c.b16 %v750, %v730
    %v911 = vpack.c.b16 %v751, %v731
    %1072 = vmatpush.bf16.msra.mxu0 %v892
    %1073 = vmatpush.bf16.msra.mxu0 %v872
    %1074 = vmatpush.bf16.msra.mxu0 %v852
    %1075 = vmatpush.bf16.msra.mxu0 %v832
    %1076 = vmatpush.bf16.msra.mxu0 %v812
    %1077 = vmatpush.bf16.msra.mxu0 %v792
    %1078 = vmatpush.bf16.msra.mxu0 %v772
    %1079 = vmatpush.bf16.msra.mxu0 %v752
    %1080 = vmatmul.bf16.gmra.mxu0 %v64
    %v1081 = vpop.f32.mrf.mxu0
    %v1082 = vadd.f32 %v232, %v1081
    %v1083 = vpop.f32.mrf.mxu0
    %v1084 = vadd.f32 %v232, %v1083
    %1085 = vmatmul.bf16.gmra.mxu0 %v65
    %v1086 = vpop.f32.mrf.mxu0
    %v1087 = vadd.f32 %v232, %v1086
    %v1088 = vpop.f32.mrf.mxu0
    %v1089 = vadd.f32 %v232, %v1088
    %1090 = vdwg.mxu0
    %1091 = vmatpush.bf16.msra.mxu0 %v893
    %1092 = vmatpush.bf16.msra.mxu0 %v873
    %1093 = vmatpush.bf16.msra.mxu0 %v853
    %1094 = vmatpush.bf16.msra.mxu0 %v833
    %1095 = vmatpush.bf16.msra.mxu0 %v813
    %1096 = vmatpush.bf16.msra.mxu0 %v793
    %1097 = vmatpush.bf16.msra.mxu0 %v773
    %1098 = vmatpush.bf16.msra.mxu0 %v753
    %1099 = vmatmul.bf16.gmra.mxu0 %v64
    %v1100 = vpop.f32.mrf.mxu0
    %v1101 = vadd.f32 %v233, %v1100
    %v1102 = vpop.f32.mrf.mxu0
    %v1103 = vadd.f32 %v233, %v1102
    %1104 = vmatmul.bf16.gmra.mxu0 %v65
    %v1105 = vpop.f32.mrf.mxu0
    %v1106 = vadd.f32 %v233, %v1105
    %v1107 = vpop.f32.mrf.mxu0
    %v1108 = vadd.f32 %v233, %v1107
    %1109 = vdwg.mxu0
    %1110 = vmatpush.bf16.msra.mxu0 %v894
    %1111 = vmatpush.bf16.msra.mxu0 %v874
    %1112 = vmatpush.bf16.msra.mxu0 %v854
    %1113 = vmatpush.bf16.msra.mxu0 %v834
    %1114 = vmatpush.bf16.msra.mxu0 %v814
    %1115 = vmatpush.bf16.msra.mxu0 %v794
    %1116 = vmatpush.bf16.msra.mxu0 %v774
    %1117 = vmatpush.bf16.msra.mxu0 %v754
    %1118 = vmatmul.bf16.gmra.mxu0 %v64
    %v1119 = vpop.f32.mrf.mxu0
    %v1120 = vadd.f32 %v234, %v1119
    %v1121 = vpop.f32.mrf.mxu0
    %v1122 = vadd.f32 %v234, %v1121
    %1123 = vmatmul.bf16.gmra.mxu0 %v65
    %v1124 = vpop.f32.mrf.mxu0
    %v1125 = vadd.f32 %v234, %v1124
    %v1126 = vpop.f32.mrf.mxu0
    %v1127 = vadd.f32 %v234, %v1126
    %1128 = vdwg.mxu0
    %1129 = vmatpush.bf16.msra.mxu0 %v895
    %1130 = vmatpush.bf16.msra.mxu0 %v875
    %1131 = vmatpush.bf16.msra.mxu0 %v855
    %1132 = vmatpush.bf16.msra.mxu0 %v835
    %1133 = vmatpush.bf16.msra.mxu0 %v815
    %1134 = vmatpush.bf16.msra.mxu0 %v795
    %1135 = vmatpush.bf16.msra.mxu0 %v775
    %1136 = vmatpush.bf16.msra.mxu0 %v755
    %1137 = vmatmul.bf16.gmra.mxu0 %v64
    %v1138 = vpop.f32.mrf.mxu0
    %v1139 = vadd.f32 %v235, %v1138
    %v1140 = vpop.f32.mrf.mxu0
    %v1141 = vadd.f32 %v235, %v1140
    %1142 = vmatmul.bf16.gmra.mxu0 %v65
    %v1143 = vpop.f32.mrf.mxu0
    %v1144 = vadd.f32 %v235, %v1143
    %v1145 = vpop.f32.mrf.mxu0
    %v1146 = vadd.f32 %v235, %v1145
    %1147 = vdwg.mxu0
    %1148 = vmatpush.bf16.msra.mxu0 %v896
    %1149 = vmatpush.bf16.msra.mxu0 %v876
    %1150 = vmatpush.bf16.msra.mxu0 %v856
    %1151 = vmatpush.bf16.msra.mxu0 %v836
    %1152 = vmatpush.bf16.msra.mxu0 %v816
    %1153 = vmatpush.bf16.msra.mxu0 %v796
    %1154 = vmatpush.bf16.msra.mxu0 %v776
    %1155 = vmatpush.bf16.msra.mxu0 %v756
    %1156 = vmatmul.bf16.gmra.mxu0 %v64
    %v1157 = vpop.f32.mrf.mxu0
    %v1158 = vadd.f32 %v236, %v1157
    %v1159 = vpop.f32.mrf.mxu0
    %v1160 = vadd.f32 %v236, %v1159
    %1161 = vmatmul.bf16.gmra.mxu0 %v65
    %v1162 = vpop.f32.mrf.mxu0
    %v1163 = vadd.f32 %v236, %v1162
    %v1164 = vpop.f32.mrf.mxu0
    %v1165 = vadd.f32 %v236, %v1164
    %1166 = vdwg.mxu0
    %1167 = vmatpush.bf16.msra.mxu0 %v897
    %1168 = vmatpush.bf16.msra.mxu0 %v877
    %1169 = vmatpush.bf16.msra.mxu0 %v857
    %1170 = vmatpush.bf16.msra.mxu0 %v837
    %1171 = vmatpush.bf16.msra.mxu0 %v817
    %1172 = vmatpush.bf16.msra.mxu0 %v797
    %1173 = vmatpush.bf16.msra.mxu0 %v777
    %1174 = vmatpush.bf16.msra.mxu0 %v757
    %1175 = vmatmul.bf16.gmra.mxu0 %v64
    %v1176 = vpop.f32.mrf.mxu0
    %v1177 = vadd.f32 %v237, %v1176
    %v1178 = vpop.f32.mrf.mxu0
    %v1179 = vadd.f32 %v237, %v1178
    %1180 = vmatmul.bf16.gmra.mxu0 %v65
    %v1181 = vpop.f32.mrf.mxu0
    %v1182 = vadd.f32 %v237, %v1181
    %v1183 = vpop.f32.mrf.mxu0
    %v1184 = vadd.f32 %v237, %v1183
    %1185 = vdwg.mxu0
    %1186 = vmatpush.bf16.msra.mxu0 %v898
    %1187 = vmatpush.bf16.msra.mxu0 %v878
    %1188 = vmatpush.bf16.msra.mxu0 %v858
    %1189 = vmatpush.bf16.msra.mxu0 %v838
    %1190 = vmatpush.bf16.msra.mxu0 %v818
    %1191 = vmatpush.bf16.msra.mxu0 %v798
    %1192 = vmatpush.bf16.msra.mxu0 %v778
    %1193 = vmatpush.bf16.msra.mxu0 %v758
    %1194 = vmatmul.bf16.gmra.mxu0 %v64
    %v1195 = vpop.f32.mrf.mxu0
    %v1196 = vadd.f32 %v238, %v1195
    %v1197 = vpop.f32.mrf.mxu0
    %v1198 = vadd.f32 %v238, %v1197
    %1199 = vmatmul.bf16.gmra.mxu0 %v65
    %v1200 = vpop.f32.mrf.mxu0
    %v1201 = vadd.f32 %v238, %v1200
    %v1202 = vpop.f32.mrf.mxu0
    %v1203 = vadd.f32 %v238, %v1202
    %1204 = vdwg.mxu0
    %1205 = vmatpush.bf16.msra.mxu0 %v899
    %1206 = vmatpush.bf16.msra.mxu0 %v879
    %1207 = vmatpush.bf16.msra.mxu0 %v859
    %1208 = vmatpush.bf16.msra.mxu0 %v839
    %1209 = vmatpush.bf16.msra.mxu0 %v819
    %1210 = vmatpush.bf16.msra.mxu0 %v799
    %1211 = vmatpush.bf16.msra.mxu0 %v779
    %1212 = vmatpush.bf16.msra.mxu0 %v759
    %1213 = vmatmul.bf16.gmra.mxu0 %v64
    %v1214 = vpop.f32.mrf.mxu0
    %v1215 = vadd.f32 %v239, %v1214
    %v1216 = vpop.f32.mrf.mxu0
    %v1217 = vadd.f32 %v239, %v1216
    %1218 = vmatmul.bf16.gmra.mxu0 %v65
    %v1219 = vpop.f32.mrf.mxu0
    %v1220 = vadd.f32 %v239, %v1219
    %v1221 = vpop.f32.mrf.mxu0
    %v1222 = vadd.f32 %v239, %v1221
    %1223 = vdwg.mxu0
    %1224 = vmatpush.bf16.msra.mxu0 %v900
    %1225 = vmatpush.bf16.msra.mxu0 %v880
    %1226 = vmatpush.bf16.msra.mxu0 %v860
    %1227 = vmatpush.bf16.msra.mxu0 %v840
    %1228 = vmatpush.bf16.msra.mxu0 %v820
    %1229 = vmatpush.bf16.msra.mxu0 %v800
    %1230 = vmatpush.bf16.msra.mxu0 %v780
    %1231 = vmatpush.bf16.msra.mxu0 %v760
    %1232 = vmatmul.bf16.gmra.mxu0 %v64
    %v1233 = vpop.f32.mrf.mxu0
    %v1234 = vadd.f32 %v240, %v1233
    %v1235 = vpop.f32.mrf.mxu0
    %v1236 = vadd.f32 %v240, %v1235
    %1237 = vmatmul.bf16.gmra.mxu0 %v65
    %v1238 = vpop.f32.mrf.mxu0
    %v1239 = vadd.f32 %v240, %v1238
    %v1240 = vpop.f32.mrf.mxu0
    %v1241 = vadd.f32 %v240, %v1240
    %1242 = vdwg.mxu0
    %1243 = vmatpush.bf16.msra.mxu0 %v901
    %1244 = vmatpush.bf16.msra.mxu0 %v881
    %1245 = vmatpush.bf16.msra.mxu0 %v861
    %1246 = vmatpush.bf16.msra.mxu0 %v841
    %1247 = vmatpush.bf16.msra.mxu0 %v821
    %1248 = vmatpush.bf16.msra.mxu0 %v801
    %1249 = vmatpush.bf16.msra.mxu0 %v781
    %1250 = vmatpush.bf16.msra.mxu0 %v761
    %1251 = vmatmul.bf16.gmra.mxu0 %v64
    %v1252 = vpop.f32.mrf.mxu0
    %v1253 = vadd.f32 %v241, %v1252
    %v1254 = vpop.f32.mrf.mxu0
    %v1255 = vadd.f32 %v241, %v1254
    %1256 = vmatmul.bf16.gmra.mxu0 %v65
    %v1257 = vpop.f32.mrf.mxu0
    %v1258 = vadd.f32 %v241, %v1257
    %v1259 = vpop.f32.mrf.mxu0
    %v1260 = vadd.f32 %v241, %v1259
    %1261 = vdwg.mxu0
    %1262 = vmatpush.bf16.msra.mxu0 %v902
    %1263 = vmatpush.bf16.msra.mxu0 %v882
    %1264 = vmatpush.bf16.msra.mxu0 %v862
    %1265 = vmatpush.bf16.msra.mxu0 %v842
    %1266 = vmatpush.bf16.msra.mxu0 %v822
    %1267 = vmatpush.bf16.msra.mxu0 %v802
    %1268 = vmatpush.bf16.msra.mxu0 %v782
    %1269 = vmatpush.bf16.msra.mxu0 %v762
    %1270 = vmatmul.bf16.gmra.mxu0 %v64
    %v1271 = vpop.f32.mrf.mxu0
    %v1272 = vadd.f32 %v242, %v1271
    %v1273 = vpop.f32.mrf.mxu0
    %v1274 = vadd.f32 %v242, %v1273
    %1275 = vmatmul.bf16.gmra.mxu0 %v65
    %v1276 = vpop.f32.mrf.mxu0
    %v1277 = vadd.f32 %v242, %v1276
    %v1278 = vpop.f32.mrf.mxu0
    %v1279 = vadd.f32 %v242, %v1278
    %1280 = vdwg.mxu0
    %1281 = vmatpush.bf16.msra.mxu0 %v903
    %1282 = vmatpush.bf16.msra.mxu0 %v883
    %1283 = vmatpush.bf16.msra.mxu0 %v863
    %1284 = vmatpush.bf16.msra.mxu0 %v843
    %1285 = vmatpush.bf16.msra.mxu0 %v823
    %1286 = vmatpush.bf16.msra.mxu0 %v803
    %1287 = vmatpush.bf16.msra.mxu0 %v783
    %1288 = vmatpush.bf16.msra.mxu0 %v763
    %1289 = vmatmul.bf16.gmra.mxu0 %v64
    %v1290 = vpop.f32.mrf.mxu0
    %v1291 = vadd.f32 %v243, %v1290
    %v1292 = vpop.f32.mrf.mxu0
    %v1293 = vadd.f32 %v243, %v1292
    %1294 = vmatmul.bf16.gmra.mxu0 %v65
    %v1295 = vpop.f32.mrf.mxu0
    %v1296 = vadd.f32 %v243, %v1295
    %v1297 = vpop.f32.mrf.mxu0
    %v1298 = vadd.f32 %v243, %v1297
    %1299 = vdwg.mxu0
    %1300 = vmatpush.bf16.msra.mxu0 %v904
    %1301 = vmatpush.bf16.msra.mxu0 %v884
    %1302 = vmatpush.bf16.msra.mxu0 %v864
    %1303 = vmatpush.bf16.msra.mxu0 %v844
    %1304 = vmatpush.bf16.msra.mxu0 %v824
    %1305 = vmatpush.bf16.msra.mxu0 %v804
    %1306 = vmatpush.bf16.msra.mxu0 %v784
    %1307 = vmatpush.bf16.msra.mxu0 %v764
    %1308 = vmatmul.bf16.gmra.mxu0 %v64
    %v1309 = vpop.f32.mrf.mxu0
    %v1310 = vadd.f32 %v244, %v1309
    %v1311 = vpop.f32.mrf.mxu0
    %v1312 = vadd.f32 %v244, %v1311
    %1313 = vmatmul.bf16.gmra.mxu0 %v65
    %v1314 = vpop.f32.mrf.mxu0
    %v1315 = vadd.f32 %v244, %v1314
    %v1316 = vpop.f32.mrf.mxu0
    %v1317 = vadd.f32 %v244, %v1316
    %1318 = vdwg.mxu0
    %1319 = vmatpush.bf16.msra.mxu0 %v905
    %1320 = vmatpush.bf16.msra.mxu0 %v885
    %1321 = vmatpush.bf16.msra.mxu0 %v865
    %1322 = vmatpush.bf16.msra.mxu0 %v845
    %1323 = vmatpush.bf16.msra.mxu0 %v825
    %1324 = vmatpush.bf16.msra.mxu0 %v805
    %1325 = vmatpush.bf16.msra.mxu0 %v785
    %1326 = vmatpush.bf16.msra.mxu0 %v765
    %1327 = vmatmul.bf16.gmra.mxu0 %v64
    %v1328 = vpop.f32.mrf.mxu0
    %v1329 = vadd.f32 %v245, %v1328
    %v1330 = vpop.f32.mrf.mxu0
    %v1331 = vadd.f32 %v245, %v1330
    %1332 = vmatmul.bf16.gmra.mxu0 %v65
    %v1333 = vpop.f32.mrf.mxu0
    %v1334 = vadd.f32 %v245, %v1333
    %v1335 = vpop.f32.mrf.mxu0
    %v1336 = vadd.f32 %v245, %v1335
    %1337 = vdwg.mxu0
    %1338 = vmatpush.bf16.msra.mxu0 %v906
    %1339 = vmatpush.bf16.msra.mxu0 %v886
    %1340 = vmatpush.bf16.msra.mxu0 %v866
    %1341 = vmatpush.bf16.msra.mxu0 %v846
    %1342 = vmatpush.bf16.msra.mxu0 %v826
    %1343 = vmatpush.bf16.msra.mxu0 %v806
    %1344 = vmatpush.bf16.msra.mxu0 %v786
    %1345 = vmatpush.bf16.msra.mxu0 %v766
    %1346 = vmatmul.bf16.gmra.mxu0 %v64
    %v1347 = vpop.f32.mrf.mxu0
    %v1348 = vadd.f32 %v246, %v1347
    %v1349 = vpop.f32.mrf.mxu0
    %v1350 = vadd.f32 %v246, %v1349
    %1351 = vmatmul.bf16.gmra.mxu0 %v65
    %v1352 = vpop.f32.mrf.mxu0
    %v1353 = vadd.f32 %v246, %v1352
    %v1354 = vpop.f32.mrf.mxu0
    %v1355 = vadd.f32 %v246, %v1354
    %1356 = vdwg.mxu0
    %1357 = vmatpush.bf16.msra.mxu0 %v907
    %1358 = vmatpush.bf16.msra.mxu0 %v887
    %1359 = vmatpush.bf16.msra.mxu0 %v867
    %1360 = vmatpush.bf16.msra.mxu0 %v847
    %1361 = vmatpush.bf16.msra.mxu0 %v827
    %1362 = vmatpush.bf16.msra.mxu0 %v807
    %1363 = vmatpush.bf16.msra.mxu0 %v787
    %1364 = vmatpush.bf16.msra.mxu0 %v767
    %1365 = vmatmul.bf16.gmra.mxu0 %v64
    %v1366 = vpop.f32.mrf.mxu0
    %v1367 = vadd.f32 %v247, %v1366
    %v1368 = vpop.f32.mrf.mxu0
    %v1369 = vadd.f32 %v247, %v1368
    %1370 = vmatmul.bf16.gmra.mxu0 %v65
    %v1371 = vpop.f32.mrf.mxu0
    %v1372 = vadd.f32 %v247, %v1371
    %v1373 = vpop.f32.mrf.mxu0
    %v1374 = vadd.f32 %v247, %v1373
    %1375 = vdwg.mxu0
    %1376 = vmatpush.bf16.msra.mxu0 %v908
    %1377 = vmatpush.bf16.msra.mxu0 %v888
    %1378 = vmatpush.bf16.msra.mxu0 %v868
    %1379 = vmatpush.bf16.msra.mxu0 %v848
    %1380 = vmatpush.bf16.msra.mxu0 %v828
    %1381 = vmatpush.bf16.msra.mxu0 %v808
    %1382 = vmatpush.bf16.msra.mxu0 %v788
    %1383 = vmatpush.bf16.msra.mxu0 %v768
    %1384 = vmatmul.bf16.gmra.mxu0 %v64
    %v1385 = vpop.f32.mrf.mxu0
    %v1386 = vadd.f32 %v248, %v1385
    %v1387 = vpop.f32.mrf.mxu0
    %v1388 = vadd.f32 %v248, %v1387
    %1389 = vmatmul.bf16.gmra.mxu0 %v65
    %v1390 = vpop.f32.mrf.mxu0
    %v1391 = vadd.f32 %v248, %v1390
    %v1392 = vpop.f32.mrf.mxu0
    %v1393 = vadd.f32 %v248, %v1392
    %1394 = vdwg.mxu0
    %1395 = vmatpush.bf16.msra.mxu0 %v909
    %1396 = vmatpush.bf16.msra.mxu0 %v889
    %1397 = vmatpush.bf16.msra.mxu0 %v869
    %1398 = vmatpush.bf16.msra.mxu0 %v849
    %1399 = vmatpush.bf16.msra.mxu0 %v829
    %1400 = vmatpush.bf16.msra.mxu0 %v809
    %1401 = vmatpush.bf16.msra.mxu0 %v789
    %1402 = vmatpush.bf16.msra.mxu0 %v769
    %1403 = vmatmul.bf16.gmra.mxu0 %v64
    %v1404 = vpop.f32.mrf.mxu0
    %v1405 = vadd.f32 %v249, %v1404
    %v1406 = vpop.f32.mrf.mxu0
    %v1407 = vadd.f32 %v249, %v1406
    %1408 = vmatmul.bf16.gmra.mxu0 %v65
    %v1409 = vpop.f32.mrf.mxu0
    %v1410 = vadd.f32 %v249, %v1409
    %v1411 = vpop.f32.mrf.mxu0
    %v1412 = vadd.f32 %v249, %v1411
    %1413 = vdwg.mxu0
    %1414 = vmatpush.bf16.msra.mxu0 %v910
    %1415 = vmatpush.bf16.msra.mxu0 %v890
    %1416 = vmatpush.bf16.msra.mxu0 %v870
    %1417 = vmatpush.bf16.msra.mxu0 %v850
    %1418 = vmatpush.bf16.msra.mxu0 %v830
    %1419 = vmatpush.bf16.msra.mxu0 %v810
    %1420 = vmatpush.bf16.msra.mxu0 %v790
    %1421 = vmatpush.bf16.msra.mxu0 %v770
    %1422 = vmatmul.bf16.gmra.mxu0 %v64
    %v1423 = vpop.f32.mrf.mxu0
    %v1424 = vadd.f32 %v250, %v1423
    %v1425 = vpop.f32.mrf.mxu0
    %v1426 = vadd.f32 %v250, %v1425
    %1427 = vmatmul.bf16.gmra.mxu0 %v65
    %v1428 = vpop.f32.mrf.mxu0
    %v1429 = vadd.f32 %v250, %v1428
    %v1430 = vpop.f32.mrf.mxu0
    %v1431 = vadd.f32 %v250, %v1430
    %1432 = vdwg.mxu0
    %1433 = vmatpush.bf16.msra.mxu0 %v911
    %1434 = vmatpush.bf16.msra.mxu0 %v891
    %1435 = vmatpush.bf16.msra.mxu0 %v871
    %1436 = vmatpush.bf16.msra.mxu0 %v851
    %1437 = vmatpush.bf16.msra.mxu0 %v831
    %1438 = vmatpush.bf16.msra.mxu0 %v811
    %1439 = vmatpush.bf16.msra.mxu0 %v791
    %1440 = vmatpush.bf16.msra.mxu0 %v771
    %1441 = vmatmul.bf16.gmra.mxu0 %v64
    %v1442 = vpop.f32.mrf.mxu0
    %v1443 = vadd.f32 %v251, %v1442
    %v1444 = vpop.f32.mrf.mxu0
    %v1445 = vadd.f32 %v251, %v1444
    %1446 = vmatmul.bf16.gmra.mxu0 %v65
    %v1447 = vpop.f32.mrf.mxu0
    %v1448 = vadd.f32 %v251, %v1447
    %v1449 = vpop.f32.mrf.mxu0
    %v1450 = vadd.f32 %v251, %v1449
    %1451 = vdwg.mxu0
    %v1452 = vpack.c.bf16 %v1101, %v1082
    %v1453 = vpack.c.bf16 %v1139, %v1120
    %v1454 = vpack.c.bf16 %v1177, %v1158
    %v1455 = vpack.c.bf16 %v1215, %v1196
    %v1456 = vpack.c.bf16 %v1253, %v1234
    %v1457 = vpack.c.bf16 %v1291, %v1272
    %v1458 = vpack.c.bf16 %v1329, %v1310
    %v1459 = vpack.c.bf16 %v1367, %v1348
    %v1460 = vpack.c.bf16 %v1405, %v1386
    %v1461 = vpack.c.bf16 %v1443, %v1424
    %v1462 = vpack.c.bf16 %v1103, %v1084
    %v1463 = vpack.c.bf16 %v1141, %v1122
    %v1464 = vpack.c.bf16 %v1179, %v1160
    %v1465 = vpack.c.bf16 %v1217, %v1198
    %v1466 = vpack.c.bf16 %v1255, %v1236
    %v1467 = vpack.c.bf16 %v1293, %v1274
    %v1468 = vpack.c.bf16 %v1331, %v1312
    %v1469 = vpack.c.bf16 %v1369, %v1350
    %v1470 = vpack.c.bf16 %v1407, %v1388
    %v1471 = vpack.c.bf16 %v1445, %v1426
    %v1472 = vpack.c.bf16 %v1106, %v1087
    %v1473 = vpack.c.bf16 %v1144, %v1125
    %v1474 = vpack.c.bf16 %v1182, %v1163
    %v1475 = vpack.c.bf16 %v1220, %v1201
    %v1476 = vpack.c.bf16 %v1258, %v1239
    %v1477 = vpack.c.bf16 %v1296, %v1277
    %v1478 = vpack.c.bf16 %v1334, %v1315
    %v1479 = vpack.c.bf16 %v1372, %v1353
    %v1480 = vpack.c.bf16 %v1410, %v1391
    %v1481 = vpack.c.bf16 %v1448, %v1429
    %v1482 = vpack.c.bf16 %v1108, %v1089
    %v1483 = vpack.c.bf16 %v1146, %v1127
    %v1484 = vpack.c.bf16 %v1184, %v1165
    %v1485 = vpack.c.bf16 %v1222, %v1203
    %v1486 = vpack.c.bf16 %v1260, %v1241
    %v1487 = vpack.c.bf16 %v1298, %v1279
    %v1488 = vpack.c.bf16 %v1336, %v1317
    %v1489 = vpack.c.bf16 %v1374, %v1355
    %v1490 = vpack.c.bf16 %v1412, %v1393
    %v1491 = vpack.c.bf16 %v1450, %v1431
    %1492 = vst [vmem:[#allocation8] sm:$0xff] %v1452
    %1493 = vst [vmem:[#allocation8 + $0x8] sm:$0xff] %v1453
    %1494 = vst [vmem:[#allocation8 + $0x10] sm:$0xff] %v1454
    %1495 = vst [vmem:[#allocation8 + $0x18] sm:$0xff] %v1455
    %1496 = vst [vmem:[#allocation8 + $0x20] sm:$0xff] %v1456
    %1497 = vst [vmem:[#allocation8 + $0x28] sm:$0xff] %v1457
    %1498 = vst [vmem:[#allocation8 + $0x30] sm:$0xff] %v1458
    %1499 = vst [vmem:[#allocation8 + $0x38] sm:$0xff] %v1459
    %1500 = vst [vmem:[#allocation8 + $0x40] sm:$0xff] %v1460
    %1501 = vst [vmem:[#allocation8 + $0x48] sm:$0xff] %v1461
    %1502 = vst [vmem:[#allocation8 + $0x50] sm:$0xff] %v1462
    %1503 = vst [vmem:[#allocation8 + $0x58] sm:$0xff] %v1463
    %1504 = vst [vmem:[#allocation8 + $0x60] sm:$0xff] %v1464
    %1505 = vst [vmem:[#allocation8 + $0x68] sm:$0xff] %v1465
    %1506 = vst [vmem:[#allocation8 + $0x70] sm:$0xff] %v1466
    %1507 = vst [vmem:[#allocation8 + $0x78] sm:$0xff] %v1467
    %1508 = vst [vmem:[#allocation8 + $0x80] sm:$0xff] %v1468
    %1509 = vst [vmem:[#allocation8 + $0x88] sm:$0xff] %v1469
    %1510 = vst [vmem:[#allocation8 + $0x90] sm:$0xff] %v1470
    %1511 = vst [vmem:[#allocation8 + $0x98] sm:$0xff] %v1471
    %1512 = vst [vmem:[#allocation8 + $0xa0] sm:$0xff] %v1472
    %1513 = vst [vmem:[#allocation8 + $0xa8] sm:$0xff] %v1473
    %1514 = vst [vmem:[#allocation8 + $0xb0] sm:$0xff] %v1474
    %1515 = vst [vmem:[#allocation8 + $0xb8] sm:$0xff] %v1475
    %1516 = vst [vmem:[#allocation8 + $0xc0] sm:$0xff] %v1476
    %1517 = vst [vmem:[#allocation8 + $0xc8] sm:$0xff] %v1477
    %1518 = vst [vmem:[#allocation8 + $0xd0] sm:$0xff] %v1478
    %1519 = vst [vmem:[#allocation8 + $0xd8] sm:$0xff] %v1479
    %1520 = vst [vmem:[#allocation8 + $0xe0] sm:$0xff] %v1480
    %1521 = vst [vmem:[#allocation8 + $0xe8] sm:$0xff] %v1481
    %1522 = vst [vmem:[#allocation8 + $0xf0] sm:$0xff] %v1482
    %1523 = vst [vmem:[#allocation8 + $0xf8] sm:$0xff] %v1483
    %1524 = vst [vmem:[#allocation8 + $0x100] sm:$0xff] %v1484
    %1525 = vst [vmem:[#allocation8 + $0x108] sm:$0xff] %v1485
    %1526 = vst [vmem:[#allocation8 + $0x110] sm:$0xff] %v1486
    %1527 = vst [vmem:[#allocation8 + $0x118] sm:$0xff] %v1487
    %1528 = vst [vmem:[#allocation8 + $0x120] sm:$0xff] %v1488
    %1529 = vst [vmem:[#allocation8 + $0x128] sm:$0xff] %v1489
    %1530 = vst [vmem:[#allocation8 + $0x130] sm:$0xff] %v1490
    %1531 = vst [vmem:[#allocation8 + $0x138] sm:$0xff] %v1491
    // Predicated region
    $region26: #{tpu_custom_call.1} parent=1 // pred_check
      _
    $region27: #{tpu_custom_call.1} parent=1 // pred_check_branch
      %1533 = sbr.rel (0) target = $region29
    $region28: #{tpu_custom_call.1} parent=1 // pred_region
      %1535 = vsyncadd [#allocation4], 0
      %s1536 = sshll.u32 [#allocation8], 4
      %s1537 = int_to_ptr.vmem [resolvable:$true] %s1536
      %s1538 = sshll.u32 %s3, 4
      %s1539 = int_to_ptr.hbm [resolvable:$true] %s1538
      %1544 = dma.vmem_to_hbm [thread:$0]  %s1537, 5120, %s1539, [#allocation4], 1280, 1280, 80
    $region29: #{tpu_custom_call.1} parent=1 // pred_fallthru
      _
    // Predicated region
    $region30: #{tpu_custom_call.1} parent=1 // pred_check
      _
    $region31: #{tpu_custom_call.1} parent=1 // pred_check_branch
      %1546 = sbr.rel (0) target = $region33
    $region32: #{tpu_custom_call.1} parent=1 // pred_region
      %1548 = dma.done [#allocation4], 5120
    $region33: #{tpu_custom_call.1} parent=1 // pred_fallthru
      _
    %1549 = vsyncpa [#allocation3], 1
    %1550 = vsyncpa [#allocation6], 1
    %1551 = vsyncpa [#allocation4], 1

</llo_original>
